<compile_context>
chip_gen: v7x
topology: tpu7x:2x2x1
jax: 0.10.0
libtpu: 0.0.40
codegen_flags: <defaults>
</compile_context>

<pallas_src>
import jax
import jax.numpy as jnp
from jax.experimental import pallas as pl
from jax.experimental.pallas import tpu as pltpu

_HIDDEN = 128


def _round_up(n, m):
    return ((n + m - 1) // m) * m


# ----------------------------- kernel body ----------------------------------

def _autoencoder_kernel(x_ref,
                        w1_ref, b1_ref,
                        w2_ref, b2_ref,
                        w3_ref, b3_ref,
                        w4_ref, b4_ref,
                        enc_ref, dec_ref):
    x = x_ref[...]                       # (tile, input_dim), compute dtype
    cd = x.dtype

    # ---- encoder: Linear(input_dim, 128) -> ReLU -> Linear(128, enc_dim) ----
    h1 = jnp.dot(x, w1_ref[...], preferred_element_type=jnp.float32) + b1_ref[...]
    h1 = jnp.maximum(h1, 0.0)                                    # ReLU (f32 VPU)
    enc = jnp.dot(h1.astype(cd), w2_ref[...],
                  preferred_element_type=jnp.float32) + b2_ref[...]

    # ---- decoder: Linear(enc_dim, 128) -> ReLU -> Linear(128, input_dim) ----
    h2 = jnp.dot(enc.astype(cd), w3_ref[...],
                 preferred_element_type=jnp.float32) + b3_ref[...]
    h2 = jnp.maximum(h2, 0.0)                                    # ReLU (f32 VPU)
    dec = jnp.dot(h2.astype(cd), w4_ref[...],
                  preferred_element_type=jnp.float32) + b4_ref[...]

    # True-width stores (no padding; outputs already lane-aligned blocks).
    enc_ref[...] = enc.astype(enc_ref.dtype)
    dec_ref[...] = dec.astype(dec_ref.dtype)


# --------------------------- tiling / VMEM sizing ----------------------------

def _vmem_capacity_bytes():
    try:
        info = pltpu.get_tpu_info()
        cap = getattr(info, "vmem_capacity_bytes", None)
        if cap:
            return int(cap)
    except Exception:
        pass
    return 64 * 1024 * 1024  # conservative (v7x per-TC VMEM)


def _vmem_footprint_bytes(tile, input_dim, encoding_dim, hidden,
                          in_bytes, out_bytes):
    x_b = 2 * tile * input_dim * in_bytes                        # x, double-buffered
    o_b = 2 * tile * (encoding_dim + input_dim) * out_bytes      # enc+dec, double-buffered
    w_b = (input_dim * hidden + hidden * encoding_dim +
           encoding_dim * hidden + hidden * input_dim) * in_bytes  # weights, single buffer
    bias_b = (2 * hidden + encoding_dim + input_dim) * 4
    act_b = tile * (2 * hidden + encoding_dim + input_dim) * 4   # f32 intermediates headroom
    return x_b + o_b + w_b + bias_b + act_b


def _pick_batch_tile(B, input_dim, encoding_dim, hidden,
                     in_bytes, out_bytes, vmem_budget):
    if B <= 256:
        tile = B      # single full-batch block (full array dim: any B is legal)
    else:
        # >=8 grid steps when B is large (pipelining + both TCs on v7x), tile a
        # multiple of 16 (bf16 sublane packing), capped at 512 rows (~85% of the
        # HBM roofline is already reached at 512-row tiles).
        tile = min(512, max(16, _round_up(pl.cdiv(B, 8), 16)))
    # Shrink if the working set would not fit the generation's VMEM budget.
    while tile > 16 and _vmem_footprint_bytes(
            tile, input_dim, encoding_dim, hidden, in_bytes, out_bytes) > vmem_budget:
        tile = max(16, _round_up(tile // 2, 16))
    return tile


# ------------------------------- wrapper -------------------------------------

def autoencoder_forward(x, params, *, batch_tile=None,
                        compute_dtype=jnp.bfloat16,
                        out_dtype=jnp.float32):
    """Fused autoencoder forward.  x: (B, input_dim) float32.

    Returns (encoded, decoded) with shapes (B, encoding_dim), (B, input_dim),
    exactly like the PyTorch module (f32 outputs by default).
    """
    (w1, b1), (w2, b2), (w3, b3), (w4, b4) = params
    B, input_dim = x.shape
    hidden = w1.shape[1]
    encoding_dim = w2.shape[1]

    cd = compute_dtype
    in_bytes = jnp.dtype(cd).itemsize
    out_bytes = jnp.dtype(out_dtype).itemsize

    vmem_cap = _vmem_capacity_bytes()
    if batch_tile is None:
        batch_tile = _pick_batch_tile(B, input_dim, encoding_dim, hidden,
                                      in_bytes, out_bytes,
                                      vmem_budget=int(vmem_cap * 0.6))
    assert batch_tile == B or batch_tile % 8 == 0, \
        "batch_tile must be a multiple of 8 (sublane) unless it equals B"
    grid = (pl.cdiv(B, batch_tile),)   # ragged last block is fine: rows are independent

    footprint = _vmem_footprint_bytes(batch_tile, input_dim, encoding_dim,
                                      hidden, in_bytes, out_bytes)
    vmem_limit = int(min(int(vmem_cap * 0.9),
                         max(32 * 1024 * 1024, 2 * footprint)))

    # Matmul operands in compute dtype (bf16 by default); biases stay f32 so
    # the bias add / ReLU stay on the f32 VPU path (important on v5e).
    x_c = x.astype(cd)
    w1_c, w2_c, w3_c, w4_c = (w.astype(cd) for w in (w1, w2, w3, w4))
    b1_f, b2_f, b3_f, b4_f = (b.astype(jnp.float32) for b in (b1, b2, b3, b4))
    weight_args = (w1_c, b1_f, w2_c, b2_f, w3_c, b3_f, w4_c, b4_f)

    # Advisory cost estimate for XLA's scheduler.
    flops = 4 * B * hidden * (input_dim + encoding_dim)
    weight_bytes = sum(int(w.size) * w.dtype.itemsize for w in weight_args)
    bytes_accessed = (B * input_dim * in_bytes + weight_bytes
                      + B * (encoding_dim + input_dim) * out_bytes)
    cost = pl.CostEstimate(flops=flops, transcendentals=0,
                           bytes_accessed=bytes_accessed)

    out_shape = [jax.ShapeDtypeStruct((B, encoding_dim), out_dtype),
                 jax.ShapeDtypeStruct((B, input_dim), out_dtype)]
    out_specs = [pl.BlockSpec((batch_tile, encoding_dim), lambda i: (i, 0)),
                 pl.BlockSpec((batch_tile, input_dim), lambda i: (i, 0))]

    def build(single_buffer_weights):
        def rep_spec(arr):
            nd = arr.ndim
            idx = lambda i, _nd=nd: (0,) * _nd         # constant -> DMA'd once
            if single_buffer_weights:
                return pl.BlockSpec(arr.shape, idx,
                                    pipeline_mode=pl.Buffered(buffer_count=1))
            return pl.BlockSpec(arr.shape, idx)

        in_specs = ([pl.BlockSpec((batch_tile, input_dim), lambda i: (i, 0))]
                    + [rep_spec(a) for a in weight_args])
        return pl.pallas_call(
            _autoencoder_kernel,
            out_shape=out_shape,
            grid_spec=pl.GridSpec(grid=grid, in_specs=in_specs,
                                  out_specs=out_specs),
            compiler_params=pltpu.CompilerParams(
                dimension_semantics=("parallel",),
                vmem_limit_bytes=vmem_limit),
            cost_estimate=cost,
        )

    args = (x_c, *weight_args)
    try:
        enc, dec = build(single_buffer_weights=hasattr(pl, "Buffered"))(*args)
    except Exception:
        # Graceful fallback if this JAX build rejects pipeline_mode=Buffered(1)
        # on the replicated weight specs: use default double-buffering.
        enc, dec = build(single_buffer_weights=False)(*args)
    return enc, dec


# ----------------------------- params / reference ----------------------------

def init_params(key, input_dim, encoding_dim, hidden=_HIDDEN):
    """Deterministic init mimicking PyTorch nn.Linear defaults
    (uniform in +/- 1/sqrt(fan_in)). Weights stored as (in, out)."""
    def linear(key, fan_in, fan_out):
        kw, kb = jax.random.split(key)
        bound = 1.0 / jnp.sqrt(fan_in)
        w = jax.random.uniform(kw, (fan_in, fan_out), jnp.float32, -bound, bound)
        b = jax.random.uniform(kb, (1, fan_out), jnp.float32, -bound, bound)
        return w, b

    k1, k2, k3, k4 = jax.random.split(key, 4)
    return (
        linear(k1, input_dim, hidden),       # encoder Linear(input_dim, 128)
        linear(k2, hidden, encoding_dim),    # encoder Linear(128, encoding_dim)
        linear(k3, encoding_dim, hidden),    # decoder Linear(encoding_dim, 128)
        linear(k4, hidden, input_dim),       # decoder Linear(128, input_dim)
    )


def reference_forward(x, params, compute_dtype=jnp.float32):
    """Pure-JAX reference with the same dtype policy as the kernel."""
    (w1, b1), (w2, b2), (w3, b3), (w4, b4) = params
    cd = compute_dtype
    h1 = jnp.dot(x.astype(cd), w1.astype(cd),
                 preferred_element_type=jnp.float32) + b1
    h1 = jnp.maximum(h1, 0.0)
    enc = jnp.dot(h1.astype(cd), w2.astype(cd),
                  preferred_element_type=jnp.float32) + b2
    h2 = jnp.dot(enc.astype(cd), w3.astype(cd),
                 preferred_element_type=jnp.float32) + b3
    h2 = jnp.maximum(h2, 0.0)
    dec = jnp.dot(h2.astype(cd), w4.astype(cd),
                  preferred_element_type=jnp.float32) + b4
    return enc, dec


# ------------------------------------ demo -----------------------------------

if __name__ == "__main__":
    key = jax.random.PRNGKey(0)
    k_x, k_p, k_x2 = jax.random.split(key, 3)

    batch, input_dim, encoding_dim = 48, 32, 16
    x = jax.random.normal(k_x, (batch, input_dim), dtype=jnp.float32)
    params = init_params(k_p, input_dim, encoding_dim)

    # --- strict f32 check (matches the PyTorch module numerics) ---
    enc32, dec32 = autoencoder_forward(x, params, compute_dtype=jnp.float32)
    enc32, dec32 = jax.block_until_ready((enc32, dec32))
    enc_ref32, dec_ref32 = reference_forward(x, params, jnp.float32)
    assert enc32.shape == (batch, encoding_dim) and enc32.dtype == jnp.float32
    assert dec32.shape == (batch, input_dim) and dec32.dtype == jnp.float32
    assert jnp.allclose(enc32, enc_ref32, atol=1e-4, rtol=1e-4)
    assert jnp.allclose(dec32, dec_ref32, atol=1e-4, rtol=1e-4)

    # --- default fast path: bf16 matmul operands, f32 accumulate & outputs ---
    enc_bf, dec_bf = autoencoder_forward(x, params)  # compute_dtype=bf16
    enc_bf, dec_bf = jax.block_until_ready((enc_bf, dec_bf))
    enc_refbf, dec_refbf = reference_forward(x, params, jnp.bfloat16)
    assert jnp.allclose(enc_bf, enc_refbf, atol=5e-3, rtol=5e-3)
    assert jnp.allclose(dec_bf, dec_refbf, atol=5e-3, rtol=5e-3)

    # --- optional bf16 output stores (halves the dominant HBM write stream) ---
    enc_b16, dec_b16 = autoencoder_forward(x, params, out_dtype=jnp.bfloat16)
    enc_b16, dec_b16 = jax.block_until_ready((enc_b16, dec_b16))
    assert enc_b16.dtype == jnp.bfloat16 and dec_b16.dtype == jnp.bfloat16
    assert jnp.allclose(enc_b16.astype(jnp.float32), enc_refbf, atol=2e-2, rtol=2e-2)
    assert jnp.allclose(dec_b16.astype(jnp.float32), dec_refbf, atol=2e-2, rtol=2e-2)

    # --- ragged grid: B not a multiple of the tile (exercises cdiv grid) ---
    batch2 = 300
    x2 = jax.random.normal(k_x2, (batch2, input_dim), dtype=jnp.float32)
    enc2, dec2 = autoencoder_forward(x2, params, compute_dtype=jnp.float32)
    enc2, dec2 = jax.block_until_ready((enc2, dec2))
    enc_ref2, dec_ref2 = reference_forward(x2, params, jnp.float32)
    assert enc2.shape == (batch2, encoding_dim) and dec2.shape == (batch2, input_dim)
    assert jnp.allclose(enc2, enc_ref2, atol=1e-4, rtol=1e-4)
    assert jnp.allclose(dec2, dec_ref2, atol=1e-4, rtol=1e-4)

    print("KERNEL_OK")
</pallas_src>

<mosaic_0001>
module attributes {stable_mosaic.version = 11 : i64} {
  func.func @_autoencoder_kernel(%arg0: i32, %arg1: memref<48x32xf32, #tpu.memory_space<vmem>>, %arg2: memref<32x128xf32, #tpu.memory_space<vmem>>, %arg3: memref<1x128xf32, #tpu.memory_space<vmem>>, %arg4: memref<128x16xf32, #tpu.memory_space<vmem>>, %arg5: memref<1x16xf32, #tpu.memory_space<vmem>>, %arg6: memref<16x128xf32, #tpu.memory_space<vmem>>, %arg7: memref<1x128xf32, #tpu.memory_space<vmem>>, %arg8: memref<128x32xf32, #tpu.memory_space<vmem>>, %arg9: memref<1x32xf32, #tpu.memory_space<vmem>>, %arg10: memref<48x16xf32, #tpu.memory_space<vmem>>, %arg11: memref<48x32xf32, #tpu.memory_space<vmem>>) attributes {dimension_semantics = [#tpu.dimension_semantics<parallel>], iteration_bounds = array<i64: 1>, scalar_prefetch = 0 : i64, scratch_operands = 0 : i64, tpu.core_type = #tpu.core_type<tc>, window_params = [{transform_indices = @transform_0, window_bounds = array<i64: 48, 32>}, {pipeline_mode = #tpu.pipeline_mode<synchronous>, transform_indices = @transform_1, window_bounds = array<i64: 32, 128>}, {pipeline_mode = #tpu.pipeline_mode<synchronous>, transform_indices = @transform_2, window_bounds = array<i64: 1, 128>}, {pipeline_mode = #tpu.pipeline_mode<synchronous>, transform_indices = @transform_3, window_bounds = array<i64: 128, 16>}, {pipeline_mode = #tpu.pipeline_mode<synchronous>, transform_indices = @transform_4, window_bounds = array<i64: 1, 16>}, {pipeline_mode = #tpu.pipeline_mode<synchronous>, transform_indices = @transform_5, window_bounds = array<i64: 16, 128>}, {pipeline_mode = #tpu.pipeline_mode<synchronous>, transform_indices = @transform_6, window_bounds = array<i64: 1, 128>}, {pipeline_mode = #tpu.pipeline_mode<synchronous>, transform_indices = @transform_7, window_bounds = array<i64: 128, 32>}, {pipeline_mode = #tpu.pipeline_mode<synchronous>, transform_indices = @transform_8, window_bounds = array<i64: 1, 32>}, {transform_indices = @transform_9, window_bounds = array<i64: 48, 16>}, {transform_indices = @transform_10, window_bounds = array<i64: 48, 32>}]} {
    %c0 = arith.constant 0 : index
    %c0_0 = arith.constant 0 : index
    %0 = vector.load %arg1[%c0, %c0_0] : memref<48x32xf32, #tpu.memory_space<vmem>>, vector<48x32xf32>
    %c0_1 = arith.constant 0 : index
    %c0_2 = arith.constant 0 : index
    %1 = vector.load %arg2[%c0_1, %c0_2] : memref<32x128xf32, #tpu.memory_space<vmem>>, vector<32x128xf32>
    %cst = arith.constant dense<0.000000e+00> : vector<48x128xf32>
    %2 = tpu.matmul %0, %1, %cst {dimension_numbers = #tpu.dot_dimension_numbers<[1], [0], [0], [1], [0, 0, 1, 1], [], []>} : vector<48x32xf32>, vector<32x128xf32>, vector<48x128xf32> -> vector<48x128xf32>
    %c0_3 = arith.constant 0 : index
    %c0_4 = arith.constant 0 : index
    %3 = vector.load %arg3[%c0_3, %c0_4] : memref<1x128xf32, #tpu.memory_space<vmem>>, vector<1x128xf32>
    %4 = vector.broadcast %3 : vector<1x128xf32> to vector<48x128xf32>
    %5 = arith.addf %2, %4 : vector<48x128xf32>
    %cst_5 = arith.constant 0.000000e+00 : f32
    %6 = vector.broadcast %cst_5 : f32 to vector<48x128xf32>
    %7 = arith.maximumf %5, %6 : vector<48x128xf32>
    %c0_6 = arith.constant 0 : index
    %c0_7 = arith.constant 0 : index
    %8 = vector.load %arg4[%c0_6, %c0_7] : memref<128x16xf32, #tpu.memory_space<vmem>>, vector<128x16xf32>
    %cst_8 = arith.constant dense<0.000000e+00> : vector<48x16xf32>
    %9 = tpu.matmul %7, %8, %cst_8 {dimension_numbers = #tpu.dot_dimension_numbers<[1], [0], [0], [1], [0, 0, 1, 1], [], []>} : vector<48x128xf32>, vector<128x16xf32>, vector<48x16xf32> -> vector<48x16xf32>
    %c0_9 = arith.constant 0 : index
    %c0_10 = arith.constant 0 : index
    %10 = vector.load %arg5[%c0_9, %c0_10] : memref<1x16xf32, #tpu.memory_space<vmem>>, vector<1x16xf32>
    %11 = vector.broadcast %10 : vector<1x16xf32> to vector<48x16xf32>
    %12 = arith.addf %9, %11 : vector<48x16xf32>
    %c0_11 = arith.constant 0 : index
    %c0_12 = arith.constant 0 : index
    %13 = vector.load %arg6[%c0_11, %c0_12] : memref<16x128xf32, #tpu.memory_space<vmem>>, vector<16x128xf32>
    %cst_13 = arith.constant dense<0.000000e+00> : vector<48x128xf32>
    %14 = tpu.matmul %12, %13, %cst_13 {dimension_numbers = #tpu.dot_dimension_numbers<[1], [0], [0], [1], [0, 0, 1, 1], [], []>} : vector<48x16xf32>, vector<16x128xf32>, vector<48x128xf32> -> vector<48x128xf32>
    %c0_14 = arith.constant 0 : index
    %c0_15 = arith.constant 0 : index
    %15 = vector.load %arg7[%c0_14, %c0_15] : memref<1x128xf32, #tpu.memory_space<vmem>>, vector<1x128xf32>
    %16 = vector.broadcast %15 : vector<1x128xf32> to vector<48x128xf32>
    %17 = arith.addf %14, %16 : vector<48x128xf32>
    %cst_16 = arith.constant 0.000000e+00 : f32
    %18 = vector.broadcast %cst_16 : f32 to vector<48x128xf32>
    %19 = arith.maximumf %17, %18 : vector<48x128xf32>
    %c0_17 = arith.constant 0 : index
    %c0_18 = arith.constant 0 : index
    %20 = vector.load %arg8[%c0_17, %c0_18] : memref<128x32xf32, #tpu.memory_space<vmem>>, vector<128x32xf32>
    %cst_19 = arith.constant dense<0.000000e+00> : vector<48x32xf32>
    %21 = tpu.matmul %19, %20, %cst_19 {dimension_numbers = #tpu.dot_dimension_numbers<[1], [0], [0], [1], [0, 0, 1, 1], [], []>} : vector<48x128xf32>, vector<128x32xf32>, vector<48x32xf32> -> vector<48x32xf32>
    %c0_20 = arith.constant 0 : index
    %c0_21 = arith.constant 0 : index
    %22 = vector.load %arg9[%c0_20, %c0_21] : memref<1x32xf32, #tpu.memory_space<vmem>>, vector<1x32xf32>
    %23 = vector.broadcast %22 : vector<1x32xf32> to vector<48x32xf32>
    %24 = arith.addf %21, %23 : vector<48x32xf32>
    %c0_22 = arith.constant 0 : index
    %c0_23 = arith.constant 0 : index
    %25 = vector.load %arg10[%c0_22, %c0_23] : memref<48x16xf32, #tpu.memory_space<vmem>>, vector<48x16xf32>
    tpu.vector_store %arg10[%c0_22, %c0_23], %12 {strides = array<i32>} : memref<48x16xf32, #tpu.memory_space<vmem>>, vector<48x16xf32>,
    %c0_24 = arith.constant 0 : index
    %c0_25 = arith.constant 0 : index
    %26 = vector.load %arg11[%c0_24, %c0_25] : memref<48x32xf32, #tpu.memory_space<vmem>>, vector<48x32xf32>
    tpu.vector_store %arg11[%c0_24, %c0_25], %24 {strides = array<i32>} : memref<48x32xf32, #tpu.memory_space<vmem>>, vector<48x32xf32>,
    return
  }
  func.func @transform_0(%arg0: i32) -> (i32, i32) {
    %c0_i32 = arith.constant 0 : i32
    %c0_i32_0 = arith.constant 0 : i32
    return %arg0, %c0_i32 : i32, i32
  }
  func.func @transform_1(%arg0: i32) -> (i32, i32) {
    %c0_i32 = arith.constant 0 : i32
    %c0_i32_0 = arith.constant 0 : i32
    %c0_i32_1 = arith.constant 0 : i32
    return %c0_i32, %c0_i32_0 : i32, i32
  }
  func.func @transform_2(%arg0: i32) -> (i32, i32) {
    %c0_i32 = arith.constant 0 : i32
    %c0_i32_0 = arith.constant 0 : i32
    %c0_i32_1 = arith.constant 0 : i32
    return %c0_i32, %c0_i32_0 : i32, i32
  }
  func.func @transform_3(%arg0: i32) -> (i32, i32) {
    %c0_i32 = arith.constant 0 : i32
    %c0_i32_0 = arith.constant 0 : i32
    %c0_i32_1 = arith.constant 0 : i32
    return %c0_i32, %c0_i32_0 : i32, i32
  }
  func.func @transform_4(%arg0: i32) -> (i32, i32) {
    %c0_i32 = arith.constant 0 : i32
    %c0_i32_0 = arith.constant 0 : i32
    %c0_i32_1 = arith.constant 0 : i32
    return %c0_i32, %c0_i32_0 : i32, i32
  }
  func.func @transform_5(%arg0: i32) -> (i32, i32) {
    %c0_i32 = arith.constant 0 : i32
    %c0_i32_0 = arith.constant 0 : i32
    %c0_i32_1 = arith.constant 0 : i32
    return %c0_i32, %c0_i32_0 : i32, i32
  }
  func.func @transform_6(%arg0: i32) -> (i32, i32) {
    %c0_i32 = arith.constant 0 : i32
    %c0_i32_0 = arith.constant 0 : i32
    %c0_i32_1 = arith.constant 0 : i32
    return %c0_i32, %c0_i32_0 : i32, i32
  }
  func.func @transform_7(%arg0: i32) -> (i32, i32) {
    %c0_i32 = arith.constant 0 : i32
    %c0_i32_0 = arith.constant 0 : i32
    %c0_i32_1 = arith.constant 0 : i32
    return %c0_i32, %c0_i32_0 : i32, i32
  }
  func.func @transform_8(%arg0: i32) -> (i32, i32) {
    %c0_i32 = arith.constant 0 : i32
    %c0_i32_0 = arith.constant 0 : i32
    %c0_i32_1 = arith.constant 0 : i32
    return %c0_i32, %c0_i32_0 : i32, i32
  }
  func.func @transform_9(%arg0: i32) -> (i32, i32) {
    %c0_i32 = arith.constant 0 : i32
    %c0_i32_0 = arith.constant 0 : i32
    return %arg0, %c0_i32 : i32, i32
  }
  func.func @transform_10(%arg0: i32) -> (i32, i32) {
    %c0_i32 = arith.constant 0 : i32
    %c0_i32_0 = arith.constant 0 : i32
    return %arg0, %c0_i32 : i32, i32
  }
}

module attributes {stable_mosaic.version = 11 : i64} {
  func.func @_autoencoder_kernel(%arg0: i32, %arg1: memref<48x32xf32, #tpu.memory_space<vmem>>, %arg2: memref<32x128xf32, #tpu.memory_space<vmem>>, %arg3: memref<1x128xf32, #tpu.memory_space<vmem>>, %arg4: memref<128x16xf32, #tpu.memory_space<vmem>>, %arg5: memref<1x16xf32, #tpu.memory_space<vmem>>, %arg6: memref<16x128xf32, #tpu.memory_space<vmem>>, %arg7: memref<1x128xf32, #tpu.memory_space<vmem>>, %arg8: memref<128x32xf32, #tpu.memory_space<vmem>>, %arg9: memref<1x32xf32, #tpu.memory_space<vmem>>, %arg10: memref<48x16xf32, #tpu.memory_space<vmem>>, %arg11: memref<48x32xf32, #tpu.memory_space<vmem>>) attributes {dimension_semantics = [#tpu.dimension_semantics<parallel>], iteration_bounds = array<i64: 1>, scalar_prefetch = 0 : i64, scratch_operands = 0 : i64, tpu.core_type = #tpu.core_type<tc>, window_params = [{transform_indices = @transform_0, window_bounds = array<i64: 48, 32>}, {pipeline_mode = #tpu.pipeline_mode<synchronous>, transform_indices = @transform_1, window_bounds = array<i64: 32, 128>}, {pipeline_mode = #tpu.pipeline_mode<synchronous>, transform_indices = @transform_2, window_bounds = array<i64: 1, 128>}, {pipeline_mode = #tpu.pipeline_mode<synchronous>, transform_indices = @transform_3, window_bounds = array<i64: 128, 16>}, {pipeline_mode = #tpu.pipeline_mode<synchronous>, transform_indices = @transform_4, window_bounds = array<i64: 1, 16>}, {pipeline_mode = #tpu.pipeline_mode<synchronous>, transform_indices = @transform_5, window_bounds = array<i64: 16, 128>}, {pipeline_mode = #tpu.pipeline_mode<synchronous>, transform_indices = @transform_6, window_bounds = array<i64: 1, 128>}, {pipeline_mode = #tpu.pipeline_mode<synchronous>, transform_indices = @transform_7, window_bounds = array<i64: 128, 32>}, {pipeline_mode = #tpu.pipeline_mode<synchronous>, transform_indices = @transform_8, window_bounds = array<i64: 1, 32>}, {transform_indices = @transform_9, window_bounds = array<i64: 48, 16>}, {transform_indices = @transform_10, window_bounds = array<i64: 48, 32>}]} {
    %c0 = arith.constant 0 : index
    %c0_0 = arith.constant 0 : index
    %0 = vector.load %arg1[%c0, %c0_0] : memref<48x32xf32, #tpu.memory_space<vmem>>, vector<48x32xf32>
    %c0_1 = arith.constant 0 : index
    %c0_2 = arith.constant 0 : index
    %1 = vector.load %arg2[%c0_1, %c0_2] : memref<32x128xf32, #tpu.memory_space<vmem>>, vector<32x128xf32>
    %cst = arith.constant dense<0.000000e+00> : vector<48x128xf32>
    %2 = tpu.matmul %0, %1, %cst {dimension_numbers = #tpu.dot_dimension_numbers<[1], [0], [0], [1], [0, 0, 1, 1], [], []>} : vector<48x32xf32>, vector<32x128xf32>, vector<48x128xf32> -> vector<48x128xf32>
    %c0_3 = arith.constant 0 : index
    %c0_4 = arith.constant 0 : index
    %3 = vector.load %arg3[%c0_3, %c0_4] : memref<1x128xf32, #tpu.memory_space<vmem>>, vector<1x128xf32>
    %4 = vector.broadcast %3 : vector<1x128xf32> to vector<48x128xf32>
    %5 = arith.addf %2, %4 : vector<48x128xf32>
    %cst_5 = arith.constant 0.000000e+00 : f32
    %6 = vector.broadcast %cst_5 : f32 to vector<48x128xf32>
    %7 = arith.maximumf %5, %6 : vector<48x128xf32>
    %c0_6 = arith.constant 0 : index
    %c0_7 = arith.constant 0 : index
    %8 = vector.load %arg4[%c0_6, %c0_7] : memref<128x16xf32, #tpu.memory_space<vmem>>, vector<128x16xf32>
    %cst_8 = arith.constant dense<0.000000e+00> : vector<48x16xf32>
    %9 = tpu.matmul %7, %8, %cst_8 {dimension_numbers = #tpu.dot_dimension_numbers<[1], [0], [0], [1], [0, 0, 1, 1], [], []>} : vector<48x128xf32>, vector<128x16xf32>, vector<48x16xf32> -> vector<48x16xf32>
    %c0_9 = arith.constant 0 : index
    %c0_10 = arith.constant 0 : index
    %10 = vector.load %arg5[%c0_9, %c0_10] : memref<1x16xf32, #tpu.memory_space<vmem>>, vector<1x16xf32>
    %11 = vector.broadcast %10 : vector<1x16xf32> to vector<48x16xf32>
    %12 = arith.addf %9, %11 : vector<48x16xf32>
    %c0_11 = arith.constant 0 : index
    %c0_12 = arith.constant 0 : index
    %13 = vector.load %arg6[%c0_11, %c0_12] : memref<16x128xf32, #tpu.memory_space<vmem>>, vector<16x128xf32>
    %cst_13 = arith.constant dense<0.000000e+00> : vector<48x128xf32>
    %14 = tpu.matmul %12, %13, %cst_13 {dimension_numbers = #tpu.dot_dimension_numbers<[1], [0], [0], [1], [0, 0, 1, 1], [], []>} : vector<48x16xf32>, vector<16x128xf32>, vector<48x128xf32> -> vector<48x128xf32>
    %c0_14 = arith.constant 0 : index
    %c0_15 = arith.constant 0 : index
    %15 = vector.load %arg7[%c0_14, %c0_15] : memref<1x128xf32, #tpu.memory_space<vmem>>, vector<1x128xf32>
    %16 = vector.broadcast %15 : vector<1x128xf32> to vector<48x128xf32>
    %17 = arith.addf %14, %16 : vector<48x128xf32>
    %cst_16 = arith.constant 0.000000e+00 : f32
    %18 = vector.broadcast %cst_16 : f32 to vector<48x128xf32>
    %19 = arith.maximumf %17, %18 : vector<48x128xf32>
    %c0_17 = arith.constant 0 : index
    %c0_18 = arith.constant 0 : index
    %20 = vector.load %arg8[%c0_17, %c0_18] : memref<128x32xf32, #tpu.memory_space<vmem>>, vector<128x32xf32>
    %cst_19 = arith.constant dense<0.000000e+00> : vector<48x32xf32>
    %21 = tpu.matmul %19, %20, %cst_19 {dimension_numbers = #tpu.dot_dimension_numbers<[1], [0], [0], [1], [0, 0, 1, 1], [], []>} : vector<48x128xf32>, vector<128x32xf32>, vector<48x32xf32> -> vector<48x32xf32>
    %c0_20 = arith.constant 0 : index
    %c0_21 = arith.constant 0 : index
    %22 = vector.load %arg9[%c0_20, %c0_21] : memref<1x32xf32, #tpu.memory_space<vmem>>, vector<1x32xf32>
    %23 = vector.broadcast %22 : vector<1x32xf32> to vector<48x32xf32>
    %24 = arith.addf %21, %23 : vector<48x32xf32>
    %c0_22 = arith.constant 0 : index
    %c0_23 = arith.constant 0 : index
    %25 = vector.load %arg10[%c0_22, %c0_23] : memref<48x16xf32, #tpu.memory_space<vmem>>, vector<48x16xf32>
    tpu.vector_store %arg10[%c0_22, %c0_23], %12 {strides = array<i32>} : memref<48x16xf32, #tpu.memory_space<vmem>>, vector<48x16xf32>,
    %c0_24 = arith.constant 0 : index
    %c0_25 = arith.constant 0 : index
    %26 = vector.load %arg11[%c0_24, %c0_25] : memref<48x32xf32, #tpu.memory_space<vmem>>, vector<48x32xf32>
    tpu.vector_store %arg11[%c0_24, %c0_25], %24 {strides = array<i32>} : memref<48x32xf32, #tpu.memory_space<vmem>>, vector<48x32xf32>,
    return
  }
  func.func @transform_0(%arg0: i32) -> (i32, i32) {
    %c0_i32 = arith.constant 0 : i32
    %c0_i32_0 = arith.constant 0 : i32
    return %arg0, %c0_i32 : i32, i32
  }
  func.func @transform_1(%arg0: i32) -> (i32, i32) {
    %c0_i32 = arith.constant 0 : i32
    %c0_i32_0 = arith.constant 0 : i32
    %c0_i32_1 = arith.constant 0 : i32
    return %c0_i32, %c0_i32_0 : i32, i32
  }
  func.func @transform_2(%arg0: i32) -> (i32, i32) {
    %c0_i32 = arith.constant 0 : i32
    %c0_i32_0 = arith.constant 0 : i32
    %c0_i32_1 = arith.constant 0 : i32
    return %c0_i32, %c0_i32_0 : i32, i32
  }
  func.func @transform_3(%arg0: i32) -> (i32, i32) {
    %c0_i32 = arith.constant 0 : i32
    %c0_i32_0 = arith.constant 0 : i32
    %c0_i32_1 = arith.constant 0 : i32
    return %c0_i32, %c0_i32_0 : i32, i32
  }
  func.func @transform_4(%arg0: i32) -> (i32, i32) {
    %c0_i32 = arith.constant 0 : i32
    %c0_i32_0 = arith.constant 0 : i32
    %c0_i32_1 = arith.constant 0 : i32
    return %c0_i32, %c0_i32_0 : i32, i32
  }
  func.func @transform_5(%arg0: i32) -> (i32, i32) {
    %c0_i32 = arith.constant 0 : i32
    %c0_i32_0 = arith.constant 0 : i32
    %c0_i32_1 = arith.constant 0 : i32
    return %c0_i32, %c0_i32_0 : i32, i32
  }
  func.func @transform_6(%arg0: i32) -> (i32, i32) {
    %c0_i32 = arith.constant 0 : i32
    %c0_i32_0 = arith.constant 0 : i32
    %c0_i32_1 = arith.constant 0 : i32
    return %c0_i32, %c0_i32_0 : i32, i32
  }
  func.func @transform_7(%arg0: i32) -> (i32, i32) {
    %c0_i32 = arith.constant 0 : i32
    %c0_i32_0 = arith.constant 0 : i32
    %c0_i32_1 = arith.constant 0 : i32
    return %c0_i32, %c0_i32_0 : i32, i32
  }
  func.func @transform_8(%arg0: i32) -> (i32, i32) {
    %c0_i32 = arith.constant 0 : i32
    %c0_i32_0 = arith.constant 0 : i32
    %c0_i32_1 = arith.constant 0 : i32
    return %c0_i32, %c0_i32_0 : i32, i32
  }
  func.func @transform_9(%arg0: i32) -> (i32, i32) {
    %c0_i32 = arith.constant 0 : i32
    %c0_i32_0 = arith.constant 0 : i32
    return %arg0, %c0_i32 : i32, i32
  }
  func.func @transform_10(%arg0: i32) -> (i32, i32) {
    %c0_i32 = arith.constant 0 : i32
    %c0_i32_0 = arith.constant 0 : i32
    return %arg0, %c0_i32 : i32, i32
  }
}

</mosaic_0001>

<llo_original>
// kernel: tpu_custom_call.1
$region0: #{tpu_custom_call.1}
  #allocation0 [shape = 'u32[]', space=smem, size = 0x4, offset = 0x4, fixed_abs, tag = 'smem constant byte address 0x4 - core index']
  #allocation1 [shape = 'u32[144,128]{1,0:T(1,128)}', space=vmem, size = 0x12000, scoped, tag = 'internal scratch']
  %s0 = inlined_call_operand.vmem [shape: f32[48,32], index: 0, kind: input, shape index: {}]
  %s1 = inlined_call_operand.vmem [shape: f32[32,128], index: 1, kind: input, shape index: {}]
  %s2 = inlined_call_operand.vmem [shape: f32[1,128], index: 2, kind: input, shape index: {}]
  %s3 = inlined_call_operand.vmem [shape: f32[128,16], index: 3, kind: input, shape index: {}]
  %s4 = inlined_call_operand.vmem [shape: f32[1,16], index: 4, kind: input, shape index: {}]
  %s5 = inlined_call_operand.vmem [shape: f32[16,128], index: 5, kind: input, shape index: {}]
  %s6 = inlined_call_operand.vmem [shape: f32[1,128], index: 6, kind: input, shape index: {}]
  %s7 = inlined_call_operand.vmem [shape: f32[128,32], index: 7, kind: input, shape index: {}]
  %s8 = inlined_call_operand.vmem [shape: f32[1,32], index: 8, kind: input, shape index: {}]
  %s9 = inlined_call_operand.vmem [shape: f32[48,16], index: 9, kind: output, shape index: {0}]
  %s10 = inlined_call_operand.vmem [shape: f32[48,32], index: 10, kind: output, shape index: {1}]
  %11 = xla_tuple %s9, %s10
  %s12 = sld [smem:[#allocation0]]
  $region54: #{tpu_custom_call.1} parent=0
    _
  %s14 = ssub.s32 1, %s12
  %s15 = scalar_select 0, %s14, %s12
  // Predicated region
  $region2: #{tpu_custom_call.1} parent=0 // pred_check
    _
  $region3: #{tpu_custom_call.1} parent=0 // pred_check_branch
    %17 = sbr.rel (0) target = $region5
  $region4: #{tpu_custom_call.1} parent=0 // pred_region
    _
  $region5: #{tpu_custom_call.1} parent=0 // pred_fallthru
    _
  // Predicated region
  $region6: #{tpu_custom_call.1} parent=0 // pred_check
    _
  $region7: #{tpu_custom_call.1} parent=0 // pred_check_branch
    %19 = sbr.rel (0) target = $region9
  $region8: #{tpu_custom_call.1} parent=0 // pred_region
    _
  $region9: #{tpu_custom_call.1} parent=0 // pred_fallthru
    _
  // Predicated region
  $region10: #{tpu_custom_call.1} parent=0 // pred_check
    _
  $region11: #{tpu_custom_call.1} parent=0 // pred_check_branch
    %21 = sbr.rel (0) target = $region13
  $region12: #{tpu_custom_call.1} parent=0 // pred_region
    _
  $region13: #{tpu_custom_call.1} parent=0 // pred_fallthru
    _
  // Predicated region
  $region14: #{tpu_custom_call.1} parent=0 // pred_check
    _
  $region15: #{tpu_custom_call.1} parent=0 // pred_check_branch
    %23 = sbr.rel (0) target = $region17
  $region16: #{tpu_custom_call.1} parent=0 // pred_region
    _
  $region17: #{tpu_custom_call.1} parent=0 // pred_fallthru
    _
  // Predicated region
  $region18: #{tpu_custom_call.1} parent=0 // pred_check
    _
  $region19: #{tpu_custom_call.1} parent=0 // pred_check_branch
    %25 = sbr.rel (0) target = $region21
  $region20: #{tpu_custom_call.1} parent=0 // pred_region
    _
  $region21: #{tpu_custom_call.1} parent=0 // pred_fallthru
    _
  // Predicated region
  $region22: #{tpu_custom_call.1} parent=0 // pred_check
    _
  $region23: #{tpu_custom_call.1} parent=0 // pred_check_branch
    %27 = sbr.rel (0) target = $region25
  $region24: #{tpu_custom_call.1} parent=0 // pred_region
    _
  $region25: #{tpu_custom_call.1} parent=0 // pred_fallthru
    _
  // Predicated region
  $region26: #{tpu_custom_call.1} parent=0 // pred_check
    _
  $region27: #{tpu_custom_call.1} parent=0 // pred_check_branch
    %29 = sbr.rel (0) target = $region29
  $region28: #{tpu_custom_call.1} parent=0 // pred_region
    _
  $region29: #{tpu_custom_call.1} parent=0 // pred_fallthru
    _
  // Predicated region
  $region30: #{tpu_custom_call.1} parent=0 // pred_check
    _
  $region31: #{tpu_custom_call.1} parent=0 // pred_check_branch
    %31 = sbr.rel (0) target = $region33
  $region32: #{tpu_custom_call.1} parent=0 // pred_region
    _
  $region33: #{tpu_custom_call.1} parent=0 // pred_fallthru
    _
  // Predicated region
  $region34: #{tpu_custom_call.1} parent=0 // pred_check
    _
  $region35: #{tpu_custom_call.1} parent=0 // pred_check_branch
    %33 = sbr.rel (0) target = $region37
  $region36: #{tpu_custom_call.1} parent=0 // pred_region
    _
  $region37: #{tpu_custom_call.1} parent=0 // pred_fallthru
    _
  %v34 = vld [vmem:[%s0] sm:$0xff]
  %v35 = vld [vmem:[%s0 + $0x8] sm:$0xff]
  %v36 = vld [vmem:[%s0 + $0x10] sm:$0xff]
  %v37 = vld [vmem:[%s0 + $0x18] sm:$0xff]
  %v38 = vld [vmem:[%s0 + $0x20] sm:$0xff]
  %v39 = vld [vmem:[%s0 + $0x28] sm:$0xff]
  %v40 = vld [vmem:[%s1] sm:$0xff]
  %v41 = vld [vmem:[%s1 + $0x8] sm:$0xff]
  %v42 = vld [vmem:[%s1 + $0x10] sm:$0xff]
  %v43 = vld [vmem:[%s1 + $0x18] sm:$0xff]
  %v44 = vld [vmem:[%s2] sm:$0x1]
  %v46 = vlaneseq
  %v47 = vshrl.u32 %v46, 7
  %v48 = vsub.s32 0, %v47
  %v49 = vrot.slane %v44, %v48
  %vm51 = vcmask 261120
  %v53 = vsel %vm51, %v34, 0
  %v56 = vsel %vm51, %v35, 0
  %v59 = vsel %vm51, %v36, 0
  %v62 = vsel %vm51, %v37, 0
  %v65 = vsel %vm51, %v38, 0
  %v68 = vsel %vm51, %v39, 0
  %70 = vmatprep.subr.mxu0 0.0
  %71 = vmatpush1.msra.mxu0 %v40
  %72 = vmatprep.subr.mxu0 0.0
  %73 = vmatpush1.msra.mxu0 %v41
  %74 = vmatprep.subr.mxu0 0.0
  %75 = vmatpush1.msra.mxu0 %v42
  %76 = vmatprep.subr.mxu0 0.0
  %77 = vmatpush1.msra.mxu0 %v43
  %78 = vmatprep.subr.mxu0 0.0
  %79 = vmatpush1.msra.mxu0 0.0
  %80 = vmatprep.subr.mxu0 0.0
  %81 = vmatpush1.msra.mxu0 0.0
  %82 = vmatprep.subr.mxu0 0.0
  %83 = vmatpush1.msra.mxu0 0.0
  %84 = vmatprep.subr.mxu0 0.0
  %85 = vmatpush1.msra.mxu0 0.0
  %86 = vmatprep.subr.mxu0 0.0
  %87 = vmatpush1.msra.mxu0 0.0
  %88 = vmatprep.subr.mxu0 0.0
  %89 = vmatpush1.msra.mxu0 0.0
  %90 = vmatprep.subr.mxu0 0.0
  %91 = vmatpush1.msra.mxu0 0.0
  %92 = vmatprep.subr.mxu0 0.0
  %93 = vmatpush1.msra.mxu0 0.0
  %94 = vmatprep.subr.mxu0 0.0
  %95 = vmatpush1.msra.mxu0 0.0
  %96 = vmatprep.subr.mxu0 0.0
  %97 = vmatpush1.msra.mxu0 0.0
  %98 = vmatprep.subr.mxu0 0.0
  %99 = vmatpush1.msra.mxu0 0.0
  %100 = vmatprep.subr.mxu0 0.0
  %101 = vmatpush1.msra.mxu0 0.0
  %102 = vmatprep.subr.mxu0 0.0
  %103 = vmatpush1.msra.mxu0 0.0
  %104 = vmatprep.subr.mxu0 0.0
  %105 = vmatpush1.msra.mxu0 0.0
  %106 = vmatprep.subr.mxu0 0.0
  %107 = vmatpush1.msra.mxu0 0.0
  %108 = vmatprep.subr.mxu0 0.0
  %109 = vmatpush1.msra.mxu0 0.0
  %110 = vmatprep.subr.mxu0 0.0
  %111 = vmatpush1.msra.mxu0 0.0
  %112 = vmatprep.subr.mxu0 0.0
  %113 = vmatpush1.msra.mxu0 0.0
  %114 = vmatprep.subr.mxu0 0.0
  %115 = vmatpush1.msra.mxu0 0.0
  %116 = vmatprep.subr.mxu0 0.0
  %117 = vmatpush1.msra.mxu0 0.0
  %118 = vmatprep.subr.mxu0 0.0
  %119 = vmatpush1.msra.mxu0 0.0
  %120 = vmatprep.subr.mxu0 0.0
  %121 = vmatpush1.msra.mxu0 0.0
  %122 = vmatprep.subr.mxu0 0.0
  %123 = vmatpush1.msra.mxu0 0.0
  %124 = vmatprep.subr.mxu0 0.0
  %125 = vmatpush1.msra.mxu0 0.0
  %126 = vmatprep.subr.mxu0 0.0
  %127 = vmatpush1.msra.mxu0 0.0
  %128 = vmatprep.subr.mxu0 0.0
  %129 = vmatpush1.msra.mxu0 0.0
  %130 = vmatprep.subr.mxu0 0.0
  %131 = vmatpush1.msra.mxu0 0.0
  %132 = vmatprep.subr.mxu0 0.0
  %133 = vmatpush1.msra.mxu0 0.0
  %134 = vmatprep.mubr.f32.mxu0 0.0
  %135 = vmatmul.mubr.f32.gmra.mrb[0].mxu0 %v53
  %v136 = vpop.f32.mrb[0].mxu0
  %v137 = vadd.f32 %v49, %v136
  %v138 = vpop.f32.mrb[0].mxu0
  %139 = vmatprep.mubr.f32.mxu0 0.0
  %140 = vmatmul.mubr.f32.gmra.mrb[0].mxu0 %v56
  %v141 = vpop.f32.mrb[0].mxu0
  %v142 = vadd.f32 %v49, %v141
  %v143 = vpop.f32.mrb[0].mxu0
  %144 = vmatprep.mubr.f32.mxu0 0.0
  %145 = vmatmul.mubr.f32.gmra.mrb[0].mxu0 %v59
  %v146 = vpop.f32.mrb[0].mxu0
  %v147 = vadd.f32 %v49, %v146
  %v148 = vpop.f32.mrb[0].mxu0
  %149 = vmatprep.mubr.f32.mxu0 0.0
  %150 = vmatmul.mubr.f32.gmra.mrb[0].mxu0 %v62
  %v151 = vpop.f32.mrb[0].mxu0
  %v152 = vadd.f32 %v49, %v151
  %v153 = vpop.f32.mrb[0].mxu0
  %154 = vmatprep.mubr.f32.mxu0 0.0
  %155 = vmatmul.mubr.f32.gmra.mrb[0].mxu0 %v65
  %v156 = vpop.f32.mrb[0].mxu0
  %v157 = vadd.f32 %v49, %v156
  %v158 = vpop.f32.mrb[0].mxu0
  %159 = vmatprep.mubr.f32.mxu0 0.0
  %160 = vmatmul.mubr.f32.gmra.mrb[0].mxu0 %v68
  %v161 = vpop.f32.mrb[0].mxu0
  %v162 = vadd.f32 %v49, %v161
  %v163 = vpop.f32.mrb[0].mxu0
  %164 = vdwg.mxu0
  %v165 = vmax.f32 %v137, 0.0
  %v166 = vmax.f32 %v142, 0.0
  %v167 = vmax.f32 %v147, 0.0
  %v168 = vmax.f32 %v152, 0.0
  %v169 = vmax.f32 %v157, 0.0
  %v170 = vmax.f32 %v162, 0.0
  %v171 = vld [vmem:[%s3] sm:$0xff]
  %v172 = vld [vmem:[%s3 + $0x8] sm:$0xff]
  %v173 = vld [vmem:[%s3 + $0x10] sm:$0xff]
  %v174 = vld [vmem:[%s3 + $0x18] sm:$0xff]
  %v175 = vld [vmem:[%s3 + $0x20] sm:$0xff]
  %v176 = vld [vmem:[%s3 + $0x28] sm:$0xff]
  %v177 = vld [vmem:[%s3 + $0x30] sm:$0xff]
  %v178 = vld [vmem:[%s3 + $0x38] sm:$0xff]
  %v179 = vld [vmem:[%s3 + $0x40] sm:$0xff]
  %v180 = vld [vmem:[%s3 + $0x48] sm:$0xff]
  %v181 = vld [vmem:[%s3 + $0x50] sm:$0xff]
  %v182 = vld [vmem:[%s3 + $0x58] sm:$0xff]
  %v183 = vld [vmem:[%s3 + $0x60] sm:$0xff]
  %v184 = vld [vmem:[%s3 + $0x68] sm:$0xff]
  %v185 = vld [vmem:[%s3 + $0x70] sm:$0xff]
  %v186 = vld [vmem:[%s3 + $0x78] sm:$0xff]
  %v187 = vld [vmem:[%s4] sm:$0x1]
  %v189 = vlaneseq
  %v190 = vshrl.u32 %v189, 7
  %v191 = vsub.s32 0, %v190
  %v192 = vrot.slane %v187, %v191
  %194 = vmatprep.subr.mxu0 0.0
  %195 = vmatpush1.msra.mxu0 %v171
  %196 = vmatprep.subr.mxu0 0.0
  %197 = vmatpush1.msra.mxu0 %v172
  %198 = vmatprep.subr.mxu0 0.0
  %199 = vmatpush1.msra.mxu0 %v173
  %200 = vmatprep.subr.mxu0 0.0
  %201 = vmatpush1.msra.mxu0 %v174
  %202 = vmatprep.subr.mxu0 0.0
  %203 = vmatpush1.msra.mxu0 %v175
  %204 = vmatprep.subr.mxu0 0.0
  %205 = vmatpush1.msra.mxu0 %v176
  %206 = vmatprep.subr.mxu0 0.0
  %207 = vmatpush1.msra.mxu0 %v177
  %208 = vmatprep.subr.mxu0 0.0
  %209 = vmatpush1.msra.mxu0 %v178
  %210 = vmatprep.subr.mxu0 0.0
  %211 = vmatpush1.msra.mxu0 %v179
  %212 = vmatprep.subr.mxu0 0.0
  %213 = vmatpush1.msra.mxu0 %v180
  %214 = vmatprep.subr.mxu0 0.0
  %215 = vmatpush1.msra.mxu0 %v181
  %216 = vmatprep.subr.mxu0 0.0
  %217 = vmatpush1.msra.mxu0 %v182
  %218 = vmatprep.subr.mxu0 0.0
  %219 = vmatpush1.msra.mxu0 %v183
  %220 = vmatprep.subr.mxu0 0.0
  %221 = vmatpush1.msra.mxu0 %v184
  %222 = vmatprep.subr.mxu0 0.0
  %223 = vmatpush1.msra.mxu0 %v185
  %224 = vmatprep.subr.mxu0 0.0
  %225 = vmatpush1.msra.mxu0 %v186
  %226 = vmatprep.subr.mxu0 0.0
  %227 = vmatpush1.msra.mxu0 0.0
  %228 = vmatprep.subr.mxu0 0.0
  %229 = vmatpush1.msra.mxu0 0.0
  %230 = vmatprep.subr.mxu0 0.0
  %231 = vmatpush1.msra.mxu0 0.0
  %232 = vmatprep.subr.mxu0 0.0
  %233 = vmatpush1.msra.mxu0 0.0
  %234 = vmatprep.subr.mxu0 0.0
  %235 = vmatpush1.msra.mxu0 0.0
  %236 = vmatprep.subr.mxu0 0.0
  %237 = vmatpush1.msra.mxu0 0.0
  %238 = vmatprep.subr.mxu0 0.0
  %239 = vmatpush1.msra.mxu0 0.0
  %240 = vmatprep.subr.mxu0 0.0
  %241 = vmatpush1.msra.mxu0 0.0
  %242 = vmatprep.subr.mxu0 0.0
  %243 = vmatpush1.msra.mxu0 0.0
  %244 = vmatprep.subr.mxu0 0.0
  %245 = vmatpush1.msra.mxu0 0.0
  %246 = vmatprep.subr.mxu0 0.0
  %247 = vmatpush1.msra.mxu0 0.0
  %248 = vmatprep.subr.mxu0 0.0
  %249 = vmatpush1.msra.mxu0 0.0
  %250 = vmatprep.subr.mxu0 0.0
  %251 = vmatpush1.msra.mxu0 0.0
  %252 = vmatprep.subr.mxu0 0.0
  %253 = vmatpush1.msra.mxu0 0.0
  %254 = vmatprep.subr.mxu0 0.0
  %255 = vmatpush1.msra.mxu0 0.0
  %256 = vmatprep.subr.mxu0 0.0
  %257 = vmatpush1.msra.mxu0 0.0
  %258 = vmatprep.mubr.f32.mxu0 0.0
  %259 = vmatmul.mubr.f32.gmra.mrb[0].mxu0 %v165
  %v260 = vpop.f32.mrb[0].mxu0
  %v261 = vadd.f32 %v192, %v260
  %v262 = vpop.f32.mrb[0].mxu0
  %263 = vmatprep.mubr.f32.mxu0 0.0
  %264 = vmatmul.mubr.f32.gmra.mrb[0].mxu0 %v166
  %v265 = vpop.f32.mrb[0].mxu0
  %v266 = vadd.f32 %v192, %v265
  %v267 = vpop.f32.mrb[0].mxu0
  %268 = vmatprep.mubr.f32.mxu0 0.0
  %269 = vmatmul.mubr.f32.gmra.mrb[0].mxu0 %v167
  %v270 = vpop.f32.mrb[0].mxu0
  %v271 = vadd.f32 %v192, %v270
  %v272 = vpop.f32.mrb[0].mxu0
  %273 = vmatprep.mubr.f32.mxu0 0.0
  %274 = vmatmul.mubr.f32.gmra.mrb[0].mxu0 %v168
  %v275 = vpop.f32.mrb[0].mxu0
  %v276 = vadd.f32 %v192, %v275
  %v277 = vpop.f32.mrb[0].mxu0
  %278 = vmatprep.mubr.f32.mxu0 0.0
  %279 = vmatmul.mubr.f32.gmra.mrb[0].mxu0 %v169
  %v280 = vpop.f32.mrb[0].mxu0
  %v281 = vadd.f32 %v192, %v280
  %v282 = vpop.f32.mrb[0].mxu0
  %283 = vmatprep.mubr.f32.mxu0 0.0
  %284 = vmatmul.mubr.f32.gmra.mrb[0].mxu0 %v170
  %v285 = vpop.f32.mrb[0].mxu0
  %v286 = vadd.f32 %v192, %v285
  %v287 = vpop.f32.mrb[0].mxu0
  %288 = vdwg.mxu0
  %v289 = vld [vmem:[%s5] sm:$0xff]
  %v290 = vld [vmem:[%s5 + $0x8] sm:$0xff]
  %v291 = vld [vmem:[%s6] sm:$0x1]
  %v293 = vlaneseq
  %v294 = vshrl.u32 %v293, 7
  %v295 = vsub.s32 0, %v294
  %v296 = vrot.slane %v291, %v295
  %vm298 = vcmask 130048
  %v300 = vsel %vm298, %v261, 0
  %v303 = vsel %vm298, %v266, 0
  %v306 = vsel %vm298, %v271, 0
  %v309 = vsel %vm298, %v276, 0
  %v312 = vsel %vm298, %v281, 0
  %v315 = vsel %vm298, %v286, 0
  %317 = vmatprep.subr.mxu0 0.0
  %318 = vmatpush1.msra.mxu0 %v289
  %319 = vmatprep.subr.mxu0 0.0
  %320 = vmatpush1.msra.mxu0 %v290
  %321 = vmatprep.subr.mxu0 0.0
  %322 = vmatpush1.msra.mxu0 0.0
  %323 = vmatprep.subr.mxu0 0.0
  %324 = vmatpush1.msra.mxu0 0.0
  %325 = vmatprep.subr.mxu0 0.0
  %326 = vmatpush1.msra.mxu0 0.0
  %327 = vmatprep.subr.mxu0 0.0
  %328 = vmatpush1.msra.mxu0 0.0
  %329 = vmatprep.subr.mxu0 0.0
  %330 = vmatpush1.msra.mxu0 0.0
  %331 = vmatprep.subr.mxu0 0.0
  %332 = vmatpush1.msra.mxu0 0.0
  %333 = vmatprep.subr.mxu0 0.0
  %334 = vmatpush1.msra.mxu0 0.0
  %335 = vmatprep.subr.mxu0 0.0
  %336 = vmatpush1.msra.mxu0 0.0
  %337 = vmatprep.subr.mxu0 0.0
  %338 = vmatpush1.msra.mxu0 0.0
  %339 = vmatprep.subr.mxu0 0.0
  %340 = vmatpush1.msra.mxu0 0.0
  %341 = vmatprep.subr.mxu0 0.0
  %342 = vmatpush1.msra.mxu0 0.0
  %343 = vmatprep.subr.mxu0 0.0
  %344 = vmatpush1.msra.mxu0 0.0
  %345 = vmatprep.subr.mxu0 0.0
  %346 = vmatpush1.msra.mxu0 0.0
  %347 = vmatprep.subr.mxu0 0.0
  %348 = vmatpush1.msra.mxu0 0.0
  %349 = vmatprep.subr.mxu0 0.0
  %350 = vmatpush1.msra.mxu0 0.0
  %351 = vmatprep.subr.mxu0 0.0
  %352 = vmatpush1.msra.mxu0 0.0
  %353 = vmatprep.subr.mxu0 0.0
  %354 = vmatpush1.msra.mxu0 0.0
  %355 = vmatprep.subr.mxu0 0.0
  %356 = vmatpush1.msra.mxu0 0.0
  %357 = vmatprep.subr.mxu0 0.0
  %358 = vmatpush1.msra.mxu0 0.0
  %359 = vmatprep.subr.mxu0 0.0
  %360 = vmatpush1.msra.mxu0 0.0
  %361 = vmatprep.subr.mxu0 0.0
  %362 = vmatpush1.msra.mxu0 0.0
  %363 = vmatprep.subr.mxu0 0.0
  %364 = vmatpush1.msra.mxu0 0.0
  %365 = vmatprep.subr.mxu0 0.0
  %366 = vmatpush1.msra.mxu0 0.0
  %367 = vmatprep.subr.mxu0 0.0
  %368 = vmatpush1.msra.mxu0 0.0
  %369 = vmatprep.subr.mxu0 0.0
  %370 = vmatpush1.msra.mxu0 0.0
  %371 = vmatprep.subr.mxu0 0.0
  %372 = vmatpush1.msra.mxu0 0.0
  %373 = vmatprep.subr.mxu0 0.0
  %374 = vmatpush1.msra.mxu0 0.0
  %375 = vmatprep.subr.mxu0 0.0
  %376 = vmatpush1.msra.mxu0 0.0
  %377 = vmatprep.subr.mxu0 0.0
  %378 = vmatpush1.msra.mxu0 0.0
  %379 = vmatprep.subr.mxu0 0.0
  %380 = vmatpush1.msra.mxu0 0.0
  %381 = vmatprep.mubr.f32.mxu0 0.0
  %382 = vmatmul.mubr.f32.gmra.mrb[0].mxu0 %v300
  %v383 = vpop.f32.mrb[0].mxu0
  %v384 = vadd.f32 %v296, %v383
  %v385 = vpop.f32.mrb[0].mxu0
  %386 = vmatprep.mubr.f32.mxu0 0.0
  %387 = vmatmul.mubr.f32.gmra.mrb[0].mxu0 %v303
  %v388 = vpop.f32.mrb[0].mxu0
  %v389 = vadd.f32 %v296, %v388
  %v390 = vpop.f32.mrb[0].mxu0
  %391 = vmatprep.mubr.f32.mxu0 0.0
  %392 = vmatmul.mubr.f32.gmra.mrb[0].mxu0 %v306
  %v393 = vpop.f32.mrb[0].mxu0
  %v394 = vadd.f32 %v296, %v393
  %v395 = vpop.f32.mrb[0].mxu0
  %396 = vmatprep.mubr.f32.mxu0 0.0
  %397 = vmatmul.mubr.f32.gmra.mrb[0].mxu0 %v309
  %v398 = vpop.f32.mrb[0].mxu0
  %v399 = vadd.f32 %v296, %v398
  %v400 = vpop.f32.mrb[0].mxu0
  %401 = vmatprep.mubr.f32.mxu0 0.0
  %402 = vmatmul.mubr.f32.gmra.mrb[0].mxu0 %v312
  %v403 = vpop.f32.mrb[0].mxu0
  %v404 = vadd.f32 %v296, %v403
  %v405 = vpop.f32.mrb[0].mxu0
  %406 = vmatprep.mubr.f32.mxu0 0.0
  %407 = vmatmul.mubr.f32.gmra.mrb[0].mxu0 %v315
  %v408 = vpop.f32.mrb[0].mxu0
  %v409 = vadd.f32 %v296, %v408
  %v410 = vpop.f32.mrb[0].mxu0
  %411 = vdwg.mxu0
  %v412 = vmax.f32 %v384, 0.0
  %v413 = vmax.f32 %v389, 0.0
  %v414 = vmax.f32 %v394, 0.0
  %v415 = vmax.f32 %v399, 0.0
  %v416 = vmax.f32 %v404, 0.0
  %v417 = vmax.f32 %v409, 0.0
  %v418 = vld [vmem:[%s7] sm:$0xff]
  %v419 = vld [vmem:[%s7 + $0x8] sm:$0xff]
  %v420 = vld [vmem:[%s7 + $0x10] sm:$0xff]
  %v421 = vld [vmem:[%s7 + $0x18] sm:$0xff]
  %v422 = vld [vmem:[%s7 + $0x20] sm:$0xff]
  %v423 = vld [vmem:[%s7 + $0x28] sm:$0xff]
  %v424 = vld [vmem:[%s7 + $0x30] sm:$0xff]
  %v425 = vld [vmem:[%s7 + $0x38] sm:$0xff]
  %v426 = vld [vmem:[%s7 + $0x40] sm:$0xff]
  %v427 = vld [vmem:[%s7 + $0x48] sm:$0xff]
  %v428 = vld [vmem:[%s7 + $0x50] sm:$0xff]
  %v429 = vld [vmem:[%s7 + $0x58] sm:$0xff]
  %v430 = vld [vmem:[%s7 + $0x60] sm:$0xff]
  %v431 = vld [vmem:[%s7 + $0x68] sm:$0xff]
  %v432 = vld [vmem:[%s7 + $0x70] sm:$0xff]
  %v433 = vld [vmem:[%s7 + $0x78] sm:$0xff]
  %v434 = vld [vmem:[%s8] sm:$0x1]
  %v436 = vlaneseq
  %v437 = vshrl.u32 %v436, 7
  %v438 = vsub.s32 0, %v437
  %v439 = vrot.slane %v434, %v438
  %441 = vmatprep.subr.mxu0 0.0
  %442 = vmatpush1.msra.mxu0 %v418
  %443 = vmatprep.subr.mxu0 0.0
  %444 = vmatpush1.msra.mxu0 %v419
  %445 = vmatprep.subr.mxu0 0.0
  %446 = vmatpush1.msra.mxu0 %v420
  %447 = vmatprep.subr.mxu0 0.0
  %448 = vmatpush1.msra.mxu0 %v421
  %449 = vmatprep.subr.mxu0 0.0
  %450 = vmatpush1.msra.mxu0 %v422
  %451 = vmatprep.subr.mxu0 0.0
  %452 = vmatpush1.msra.mxu0 %v423
  %453 = vmatprep.subr.mxu0 0.0
  %454 = vmatpush1.msra.mxu0 %v424
  %455 = vmatprep.subr.mxu0 0.0
  %456 = vmatpush1.msra.mxu0 %v425
  %457 = vmatprep.subr.mxu0 0.0
  %458 = vmatpush1.msra.mxu0 %v426
  %459 = vmatprep.subr.mxu0 0.0
  %460 = vmatpush1.msra.mxu0 %v427
  %461 = vmatprep.subr.mxu0 0.0
  %462 = vmatpush1.msra.mxu0 %v428
  %463 = vmatprep.subr.mxu0 0.0
  %464 = vmatpush1.msra.mxu0 %v429
  %465 = vmatprep.subr.mxu0 0.0
  %466 = vmatpush1.msra.mxu0 %v430
  %467 = vmatprep.subr.mxu0 0.0
  %468 = vmatpush1.msra.mxu0 %v431
  %469 = vmatprep.subr.mxu0 0.0
  %470 = vmatpush1.msra.mxu0 %v432
  %471 = vmatprep.subr.mxu0 0.0
  %472 = vmatpush1.msra.mxu0 %v433
  %473 = vmatprep.subr.mxu0 0.0
  %474 = vmatpush1.msra.mxu0 0.0
  %475 = vmatprep.subr.mxu0 0.0
  %476 = vmatpush1.msra.mxu0 0.0
  %477 = vmatprep.subr.mxu0 0.0
  %478 = vmatpush1.msra.mxu0 0.0
  %479 = vmatprep.subr.mxu0 0.0
  %480 = vmatpush1.msra.mxu0 0.0
  %481 = vmatprep.subr.mxu0 0.0
  %482 = vmatpush1.msra.mxu0 0.0
  %483 = vmatprep.subr.mxu0 0.0
  %484 = vmatpush1.msra.mxu0 0.0
  %485 = vmatprep.subr.mxu0 0.0
  %486 = vmatpush1.msra.mxu0 0.0
  %487 = vmatprep.subr.mxu0 0.0
  %488 = vmatpush1.msra.mxu0 0.0
  %489 = vmatprep.subr.mxu0 0.0
  %490 = vmatpush1.msra.mxu0 0.0
  %491 = vmatprep.subr.mxu0 0.0
  %492 = vmatpush1.msra.mxu0 0.0
  %493 = vmatprep.subr.mxu0 0.0
  %494 = vmatpush1.msra.mxu0 0.0
  %495 = vmatprep.subr.mxu0 0.0
  %496 = vmatpush1.msra.mxu0 0.0
  %497 = vmatprep.subr.mxu0 0.0
  %498 = vmatpush1.msra.mxu0 0.0
  %499 = vmatprep.subr.mxu0 0.0
  %500 = vmatpush1.msra.mxu0 0.0
  %501 = vmatprep.subr.mxu0 0.0
  %502 = vmatpush1.msra.mxu0 0.0
  %503 = vmatprep.subr.mxu0 0.0
  %504 = vmatpush1.msra.mxu0 0.0
  %505 = vmatprep.mubr.f32.mxu0 0.0
  %506 = vmatmul.mubr.f32.gmra.mrb[0].mxu0 %v412
  %v507 = vpop.f32.mrb[0].mxu0
  %v508 = vadd.f32 %v439, %v507
  %v509 = vpop.f32.mrb[0].mxu0
  %510 = vmatprep.mubr.f32.mxu0 0.0
  %511 = vmatmul.mubr.f32.gmra.mrb[0].mxu0 %v413
  %v512 = vpop.f32.mrb[0].mxu0
  %v513 = vadd.f32 %v439, %v512
  %v514 = vpop.f32.mrb[0].mxu0
  %515 = vmatprep.mubr.f32.mxu0 0.0
  %516 = vmatmul.mubr.f32.gmra.mrb[0].mxu0 %v414
  %v517 = vpop.f32.mrb[0].mxu0
  %v518 = vadd.f32 %v439, %v517
  %v519 = vpop.f32.mrb[0].mxu0
  %520 = vmatprep.mubr.f32.mxu0 0.0
  %521 = vmatmul.mubr.f32.gmra.mrb[0].mxu0 %v415
  %v522 = vpop.f32.mrb[0].mxu0
  %v523 = vadd.f32 %v439, %v522
  %v524 = vpop.f32.mrb[0].mxu0
  %525 = vmatprep.mubr.f32.mxu0 0.0
  %526 = vmatmul.mubr.f32.gmra.mrb[0].mxu0 %v416
  %v527 = vpop.f32.mrb[0].mxu0
  %v528 = vadd.f32 %v439, %v527
  %v529 = vpop.f32.mrb[0].mxu0
  %530 = vmatprep.mubr.f32.mxu0 0.0
  %531 = vmatmul.mubr.f32.gmra.mrb[0].mxu0 %v417
  %v532 = vpop.f32.mrb[0].mxu0
  %v533 = vadd.f32 %v439, %v532
  %v534 = vpop.f32.mrb[0].mxu0
  %535 = vdwg.mxu0
  %536 = vst.msk [vmem:[%s9] sm:$0xff] %vm298, %v261
  %537 = vst.msk [vmem:[%s9 + $0x8] sm:$0xff] %vm298, %v266
  %538 = vst.msk [vmem:[%s9 + $0x10] sm:$0xff] %vm298, %v271
  %539 = vst.msk [vmem:[%s9 + $0x18] sm:$0xff] %vm298, %v276
  %540 = vst.msk [vmem:[%s9 + $0x20] sm:$0xff] %vm298, %v281
  %541 = vst.msk [vmem:[%s9 + $0x28] sm:$0xff] %vm298, %v286
  %542 = vst.msk [vmem:[%s10] sm:$0xff] %vm51, %v508
  %543 = vst.msk [vmem:[%s10 + $0x8] sm:$0xff] %vm51, %v513
  %544 = vst.msk [vmem:[%s10 + $0x10] sm:$0xff] %vm51, %v518
  %545 = vst.msk [vmem:[%s10 + $0x18] sm:$0xff] %vm51, %v523
  %546 = vst.msk [vmem:[%s10 + $0x20] sm:$0xff] %vm51, %v528
  %547 = vst.msk [vmem:[%s10 + $0x28] sm:$0xff] %vm51, %v533
  // Predicated region
  $region38: #{tpu_custom_call.1} parent=0 // pred_check
    _
  $region39: #{tpu_custom_call.1} parent=0 // pred_check_branch
    %549 = sbr.rel (0) target = $region41
  $region40: #{tpu_custom_call.1} parent=0 // pred_region
    _
  $region41: #{tpu_custom_call.1} parent=0 // pred_fallthru
    _
  // Predicated region
  $region42: #{tpu_custom_call.1} parent=0 // pred_check
    _
  $region43: #{tpu_custom_call.1} parent=0 // pred_check_branch
    %551 = sbr.rel (0) target = $region45
  $region44: #{tpu_custom_call.1} parent=0 // pred_region
    _
  $region45: #{tpu_custom_call.1} parent=0 // pred_fallthru
    _
  // Predicated region
  $region46: #{tpu_custom_call.1} parent=0 // pred_check
    _
  $region47: #{tpu_custom_call.1} parent=0 // pred_check_branch
    %553 = sbr.rel (0) target = $region49
  $region48: #{tpu_custom_call.1} parent=0 // pred_region
    _
  $region49: #{tpu_custom_call.1} parent=0 // pred_fallthru
    _
  // Predicated region
  $region50: #{tpu_custom_call.1} parent=0 // pred_check
    _
  $region51: #{tpu_custom_call.1} parent=0 // pred_check_branch
    %555 = sbr.rel (0) target = $region53
  $region52: #{tpu_custom_call.1} parent=0 // pred_region
    _
  $region53: #{tpu_custom_call.1} parent=0 // pred_fallthru
    _

// kernel: tpu_custom_call.1
$region0: #{tpu_custom_call.1}
  #allocation0 [shape = 'u32[]', space=smem, size = 0x4, offset = 0x4, fixed_abs, tag = 'smem constant byte address 0x4 - core index']
  #allocation1 [shape = 'u32[144,128]{1,0:T(1,128)}', space=vmem, size = 0x12000, scoped, tag = 'internal scratch']
  %s0 = inlined_call_operand.vmem [shape: f32[48,32], index: 0, kind: input, shape index: {}]
  %s1 = inlined_call_operand.vmem [shape: f32[32,128], index: 1, kind: input, shape index: {}]
  %s2 = inlined_call_operand.vmem [shape: f32[1,128], index: 2, kind: input, shape index: {}]
  %s3 = inlined_call_operand.vmem [shape: f32[128,16], index: 3, kind: input, shape index: {}]
  %s4 = inlined_call_operand.vmem [shape: f32[1,16], index: 4, kind: input, shape index: {}]
  %s5 = inlined_call_operand.vmem [shape: f32[16,128], index: 5, kind: input, shape index: {}]
  %s6 = inlined_call_operand.vmem [shape: f32[1,128], index: 6, kind: input, shape index: {}]
  %s7 = inlined_call_operand.vmem [shape: f32[128,32], index: 7, kind: input, shape index: {}]
  %s8 = inlined_call_operand.vmem [shape: f32[1,32], index: 8, kind: input, shape index: {}]
  %s9 = inlined_call_operand.vmem [shape: f32[48,16], index: 9, kind: output, shape index: {0}]
  %s10 = inlined_call_operand.vmem [shape: f32[48,32], index: 10, kind: output, shape index: {1}]
  %11 = xla_tuple %s9, %s10
  %s12 = sld [smem:[#allocation0]]
  $region54: #{tpu_custom_call.1} parent=0
    _
  %s14 = ssub.s32 1, %s12
  %s15 = scalar_select 0, %s14, %s12
  // Predicated region
  $region2: #{tpu_custom_call.1} parent=0 // pred_check
    _
  $region3: #{tpu_custom_call.1} parent=0 // pred_check_branch
    %17 = sbr.rel (0) target = $region5
  $region4: #{tpu_custom_call.1} parent=0 // pred_region
    _
  $region5: #{tpu_custom_call.1} parent=0 // pred_fallthru
    _
  // Predicated region
  $region6: #{tpu_custom_call.1} parent=0 // pred_check
    _
  $region7: #{tpu_custom_call.1} parent=0 // pred_check_branch
    %19 = sbr.rel (0) target = $region9
  $region8: #{tpu_custom_call.1} parent=0 // pred_region
    _
  $region9: #{tpu_custom_call.1} parent=0 // pred_fallthru
    _
  // Predicated region
  $region10: #{tpu_custom_call.1} parent=0 // pred_check
    _
  $region11: #{tpu_custom_call.1} parent=0 // pred_check_branch
    %21 = sbr.rel (0) target = $region13
  $region12: #{tpu_custom_call.1} parent=0 // pred_region
    _
  $region13: #{tpu_custom_call.1} parent=0 // pred_fallthru
    _
  // Predicated region
  $region14: #{tpu_custom_call.1} parent=0 // pred_check
    _
  $region15: #{tpu_custom_call.1} parent=0 // pred_check_branch
    %23 = sbr.rel (0) target = $region17
  $region16: #{tpu_custom_call.1} parent=0 // pred_region
    _
  $region17: #{tpu_custom_call.1} parent=0 // pred_fallthru
    _
  // Predicated region
  $region18: #{tpu_custom_call.1} parent=0 // pred_check
    _
  $region19: #{tpu_custom_call.1} parent=0 // pred_check_branch
    %25 = sbr.rel (0) target = $region21
  $region20: #{tpu_custom_call.1} parent=0 // pred_region
    _
  $region21: #{tpu_custom_call.1} parent=0 // pred_fallthru
    _
  // Predicated region
  $region22: #{tpu_custom_call.1} parent=0 // pred_check
    _
  $region23: #{tpu_custom_call.1} parent=0 // pred_check_branch
    %27 = sbr.rel (0) target = $region25
  $region24: #{tpu_custom_call.1} parent=0 // pred_region
    _
  $region25: #{tpu_custom_call.1} parent=0 // pred_fallthru
    _
  // Predicated region
  $region26: #{tpu_custom_call.1} parent=0 // pred_check
    _
  $region27: #{tpu_custom_call.1} parent=0 // pred_check_branch
    %29 = sbr.rel (0) target = $region29
  $region28: #{tpu_custom_call.1} parent=0 // pred_region
    _
  $region29: #{tpu_custom_call.1} parent=0 // pred_fallthru
    _
  // Predicated region
  $region30: #{tpu_custom_call.1} parent=0 // pred_check
    _
  $region31: #{tpu_custom_call.1} parent=0 // pred_check_branch
    %31 = sbr.rel (0) target = $region33
  $region32: #{tpu_custom_call.1} parent=0 // pred_region
    _
  $region33: #{tpu_custom_call.1} parent=0 // pred_fallthru
    _
  // Predicated region
  $region34: #{tpu_custom_call.1} parent=0 // pred_check
    _
  $region35: #{tpu_custom_call.1} parent=0 // pred_check_branch
    %33 = sbr.rel (0) target = $region37
  $region36: #{tpu_custom_call.1} parent=0 // pred_region
    _
  $region37: #{tpu_custom_call.1} parent=0 // pred_fallthru
    _
  %v34 = vld [vmem:[%s0] sm:$0xff]
  %v35 = vld [vmem:[%s0 + $0x8] sm:$0xff]
  %v36 = vld [vmem:[%s0 + $0x10] sm:$0xff]
  %v37 = vld [vmem:[%s0 + $0x18] sm:$0xff]
  %v38 = vld [vmem:[%s0 + $0x20] sm:$0xff]
  %v39 = vld [vmem:[%s0 + $0x28] sm:$0xff]
  %v40 = vld [vmem:[%s1] sm:$0xff]
  %v41 = vld [vmem:[%s1 + $0x8] sm:$0xff]
  %v42 = vld [vmem:[%s1 + $0x10] sm:$0xff]
  %v43 = vld [vmem:[%s1 + $0x18] sm:$0xff]
  %v44 = vld [vmem:[%s2] sm:$0x1]
  %v46 = vlaneseq
  %v47 = vshrl.u32 %v46, 7
  %v48 = vsub.s32 0, %v47
  %v49 = vrot.slane %v44, %v48
  %vm51 = vcmask 261120
  %v53 = vsel %vm51, %v34, 0
  %v56 = vsel %vm51, %v35, 0
  %v59 = vsel %vm51, %v36, 0
  %v62 = vsel %vm51, %v37, 0
  %v65 = vsel %vm51, %v38, 0
  %v68 = vsel %vm51, %v39, 0
  %70 = vmatprep.subr.mxu0 0.0
  %71 = vmatpush1.msra.mxu0 %v40
  %72 = vmatprep.subr.mxu0 0.0
  %73 = vmatpush1.msra.mxu0 %v41
  %74 = vmatprep.subr.mxu0 0.0
  %75 = vmatpush1.msra.mxu0 %v42
  %76 = vmatprep.subr.mxu0 0.0
  %77 = vmatpush1.msra.mxu0 %v43
  %78 = vmatprep.subr.mxu0 0.0
  %79 = vmatpush1.msra.mxu0 0.0
  %80 = vmatprep.subr.mxu0 0.0
  %81 = vmatpush1.msra.mxu0 0.0
  %82 = vmatprep.subr.mxu0 0.0
  %83 = vmatpush1.msra.mxu0 0.0
  %84 = vmatprep.subr.mxu0 0.0
  %85 = vmatpush1.msra.mxu0 0.0
  %86 = vmatprep.subr.mxu0 0.0
  %87 = vmatpush1.msra.mxu0 0.0
  %88 = vmatprep.subr.mxu0 0.0
  %89 = vmatpush1.msra.mxu0 0.0
  %90 = vmatprep.subr.mxu0 0.0
  %91 = vmatpush1.msra.mxu0 0.0
  %92 = vmatprep.subr.mxu0 0.0
  %93 = vmatpush1.msra.mxu0 0.0
  %94 = vmatprep.subr.mxu0 0.0
  %95 = vmatpush1.msra.mxu0 0.0
  %96 = vmatprep.subr.mxu0 0.0
  %97 = vmatpush1.msra.mxu0 0.0
  %98 = vmatprep.subr.mxu0 0.0
  %99 = vmatpush1.msra.mxu0 0.0
  %100 = vmatprep.subr.mxu0 0.0
  %101 = vmatpush1.msra.mxu0 0.0
  %102 = vmatprep.subr.mxu0 0.0
  %103 = vmatpush1.msra.mxu0 0.0
  %104 = vmatprep.subr.mxu0 0.0
  %105 = vmatpush1.msra.mxu0 0.0
  %106 = vmatprep.subr.mxu0 0.0
  %107 = vmatpush1.msra.mxu0 0.0
  %108 = vmatprep.subr.mxu0 0.0
  %109 = vmatpush1.msra.mxu0 0.0
  %110 = vmatprep.subr.mxu0 0.0
  %111 = vmatpush1.msra.mxu0 0.0
  %112 = vmatprep.subr.mxu0 0.0
  %113 = vmatpush1.msra.mxu0 0.0
  %114 = vmatprep.subr.mxu0 0.0
  %115 = vmatpush1.msra.mxu0 0.0
  %116 = vmatprep.subr.mxu0 0.0
  %117 = vmatpush1.msra.mxu0 0.0
  %118 = vmatprep.subr.mxu0 0.0
  %119 = vmatpush1.msra.mxu0 0.0
  %120 = vmatprep.subr.mxu0 0.0
  %121 = vmatpush1.msra.mxu0 0.0
  %122 = vmatprep.subr.mxu0 0.0
  %123 = vmatpush1.msra.mxu0 0.0
  %124 = vmatprep.subr.mxu0 0.0
  %125 = vmatpush1.msra.mxu0 0.0
  %126 = vmatprep.subr.mxu0 0.0
  %127 = vmatpush1.msra.mxu0 0.0
  %128 = vmatprep.subr.mxu0 0.0
  %129 = vmatpush1.msra.mxu0 0.0
  %130 = vmatprep.subr.mxu0 0.0
  %131 = vmatpush1.msra.mxu0 0.0
  %132 = vmatprep.subr.mxu0 0.0
  %133 = vmatpush1.msra.mxu0 0.0
  %134 = vmatprep.mubr.f32.mxu0 0.0
  %135 = vmatmul.mubr.f32.gmra.mrb[0].mxu0 %v53
  %v136 = vpop.f32.mrb[0].mxu0
  %v137 = vadd.f32 %v49, %v136
  %v138 = vpop.f32.mrb[0].mxu0
  %139 = vmatprep.mubr.f32.mxu0 0.0
  %140 = vmatmul.mubr.f32.gmra.mrb[0].mxu0 %v56
  %v141 = vpop.f32.mrb[0].mxu0
  %v142 = vadd.f32 %v49, %v141
  %v143 = vpop.f32.mrb[0].mxu0
  %144 = vmatprep.mubr.f32.mxu0 0.0
  %145 = vmatmul.mubr.f32.gmra.mrb[0].mxu0 %v59
  %v146 = vpop.f32.mrb[0].mxu0
  %v147 = vadd.f32 %v49, %v146
  %v148 = vpop.f32.mrb[0].mxu0
  %149 = vmatprep.mubr.f32.mxu0 0.0
  %150 = vmatmul.mubr.f32.gmra.mrb[0].mxu0 %v62
  %v151 = vpop.f32.mrb[0].mxu0
  %v152 = vadd.f32 %v49, %v151
  %v153 = vpop.f32.mrb[0].mxu0
  %154 = vmatprep.mubr.f32.mxu0 0.0
  %155 = vmatmul.mubr.f32.gmra.mrb[0].mxu0 %v65
  %v156 = vpop.f32.mrb[0].mxu0
  %v157 = vadd.f32 %v49, %v156
  %v158 = vpop.f32.mrb[0].mxu0
  %159 = vmatprep.mubr.f32.mxu0 0.0
  %160 = vmatmul.mubr.f32.gmra.mrb[0].mxu0 %v68
  %v161 = vpop.f32.mrb[0].mxu0
  %v162 = vadd.f32 %v49, %v161
  %v163 = vpop.f32.mrb[0].mxu0
  %164 = vdwg.mxu0
  %v165 = vmax.f32 %v137, 0.0
  %v166 = vmax.f32 %v142, 0.0
  %v167 = vmax.f32 %v147, 0.0
  %v168 = vmax.f32 %v152, 0.0
  %v169 = vmax.f32 %v157, 0.0
  %v170 = vmax.f32 %v162, 0.0
  %v171 = vld [vmem:[%s3] sm:$0xff]
  %v172 = vld [vmem:[%s3 + $0x8] sm:$0xff]
  %v173 = vld [vmem:[%s3 + $0x10] sm:$0xff]
  %v174 = vld [vmem:[%s3 + $0x18] sm:$0xff]
  %v175 = vld [vmem:[%s3 + $0x20] sm:$0xff]
  %v176 = vld [vmem:[%s3 + $0x28] sm:$0xff]
  %v177 = vld [vmem:[%s3 + $0x30] sm:$0xff]
  %v178 = vld [vmem:[%s3 + $0x38] sm:$0xff]
  %v179 = vld [vmem:[%s3 + $0x40] sm:$0xff]
  %v180 = vld [vmem:[%s3 + $0x48] sm:$0xff]
  %v181 = vld [vmem:[%s3 + $0x50] sm:$0xff]
  %v182 = vld [vmem:[%s3 + $0x58] sm:$0xff]
  %v183 = vld [vmem:[%s3 + $0x60] sm:$0xff]
  %v184 = vld [vmem:[%s3 + $0x68] sm:$0xff]
  %v185 = vld [vmem:[%s3 + $0x70] sm:$0xff]
  %v186 = vld [vmem:[%s3 + $0x78] sm:$0xff]
  %v187 = vld [vmem:[%s4] sm:$0x1]
  %v189 = vlaneseq
  %v190 = vshrl.u32 %v189, 7
  %v191 = vsub.s32 0, %v190
  %v192 = vrot.slane %v187, %v191
  %194 = vmatprep.subr.mxu0 0.0
  %195 = vmatpush1.msra.mxu0 %v171
  %196 = vmatprep.subr.mxu0 0.0
  %197 = vmatpush1.msra.mxu0 %v172
  %198 = vmatprep.subr.mxu0 0.0
  %199 = vmatpush1.msra.mxu0 %v173
  %200 = vmatprep.subr.mxu0 0.0
  %201 = vmatpush1.msra.mxu0 %v174
  %202 = vmatprep.subr.mxu0 0.0
  %203 = vmatpush1.msra.mxu0 %v175
  %204 = vmatprep.subr.mxu0 0.0
  %205 = vmatpush1.msra.mxu0 %v176
  %206 = vmatprep.subr.mxu0 0.0
  %207 = vmatpush1.msra.mxu0 %v177
  %208 = vmatprep.subr.mxu0 0.0
  %209 = vmatpush1.msra.mxu0 %v178
  %210 = vmatprep.subr.mxu0 0.0
  %211 = vmatpush1.msra.mxu0 %v179
  %212 = vmatprep.subr.mxu0 0.0
  %213 = vmatpush1.msra.mxu0 %v180
  %214 = vmatprep.subr.mxu0 0.0
  %215 = vmatpush1.msra.mxu0 %v181
  %216 = vmatprep.subr.mxu0 0.0
  %217 = vmatpush1.msra.mxu0 %v182
  %218 = vmatprep.subr.mxu0 0.0
  %219 = vmatpush1.msra.mxu0 %v183
  %220 = vmatprep.subr.mxu0 0.0
  %221 = vmatpush1.msra.mxu0 %v184
  %222 = vmatprep.subr.mxu0 0.0
  %223 = vmatpush1.msra.mxu0 %v185
  %224 = vmatprep.subr.mxu0 0.0
  %225 = vmatpush1.msra.mxu0 %v186
  %226 = vmatprep.subr.mxu0 0.0
  %227 = vmatpush1.msra.mxu0 0.0
  %228 = vmatprep.subr.mxu0 0.0
  %229 = vmatpush1.msra.mxu0 0.0
  %230 = vmatprep.subr.mxu0 0.0
  %231 = vmatpush1.msra.mxu0 0.0
  %232 = vmatprep.subr.mxu0 0.0
  %233 = vmatpush1.msra.mxu0 0.0
  %234 = vmatprep.subr.mxu0 0.0
  %235 = vmatpush1.msra.mxu0 0.0
  %236 = vmatprep.subr.mxu0 0.0
  %237 = vmatpush1.msra.mxu0 0.0
  %238 = vmatprep.subr.mxu0 0.0
  %239 = vmatpush1.msra.mxu0 0.0
  %240 = vmatprep.subr.mxu0 0.0
  %241 = vmatpush1.msra.mxu0 0.0
  %242 = vmatprep.subr.mxu0 0.0
  %243 = vmatpush1.msra.mxu0 0.0
  %244 = vmatprep.subr.mxu0 0.0
  %245 = vmatpush1.msra.mxu0 0.0
  %246 = vmatprep.subr.mxu0 0.0
  %247 = vmatpush1.msra.mxu0 0.0
  %248 = vmatprep.subr.mxu0 0.0
  %249 = vmatpush1.msra.mxu0 0.0
  %250 = vmatprep.subr.mxu0 0.0
  %251 = vmatpush1.msra.mxu0 0.0
  %252 = vmatprep.subr.mxu0 0.0
  %253 = vmatpush1.msra.mxu0 0.0
  %254 = vmatprep.subr.mxu0 0.0
  %255 = vmatpush1.msra.mxu0 0.0
  %256 = vmatprep.subr.mxu0 0.0
  %257 = vmatpush1.msra.mxu0 0.0
  %258 = vmatprep.mubr.f32.mxu0 0.0
  %259 = vmatmul.mubr.f32.gmra.mrb[0].mxu0 %v165
  %v260 = vpop.f32.mrb[0].mxu0
  %v261 = vadd.f32 %v192, %v260
  %v262 = vpop.f32.mrb[0].mxu0
  %263 = vmatprep.mubr.f32.mxu0 0.0
  %264 = vmatmul.mubr.f32.gmra.mrb[0].mxu0 %v166
  %v265 = vpop.f32.mrb[0].mxu0
  %v266 = vadd.f32 %v192, %v265
  %v267 = vpop.f32.mrb[0].mxu0
  %268 = vmatprep.mubr.f32.mxu0 0.0
  %269 = vmatmul.mubr.f32.gmra.mrb[0].mxu0 %v167
  %v270 = vpop.f32.mrb[0].mxu0
  %v271 = vadd.f32 %v192, %v270
  %v272 = vpop.f32.mrb[0].mxu0
  %273 = vmatprep.mubr.f32.mxu0 0.0
  %274 = vmatmul.mubr.f32.gmra.mrb[0].mxu0 %v168
  %v275 = vpop.f32.mrb[0].mxu0
  %v276 = vadd.f32 %v192, %v275
  %v277 = vpop.f32.mrb[0].mxu0
  %278 = vmatprep.mubr.f32.mxu0 0.0
  %279 = vmatmul.mubr.f32.gmra.mrb[0].mxu0 %v169
  %v280 = vpop.f32.mrb[0].mxu0
  %v281 = vadd.f32 %v192, %v280
  %v282 = vpop.f32.mrb[0].mxu0
  %283 = vmatprep.mubr.f32.mxu0 0.0
  %284 = vmatmul.mubr.f32.gmra.mrb[0].mxu0 %v170
  %v285 = vpop.f32.mrb[0].mxu0
  %v286 = vadd.f32 %v192, %v285
  %v287 = vpop.f32.mrb[0].mxu0
  %288 = vdwg.mxu0
  %v289 = vld [vmem:[%s5] sm:$0xff]
  %v290 = vld [vmem:[%s5 + $0x8] sm:$0xff]
  %v291 = vld [vmem:[%s6] sm:$0x1]
  %v293 = vlaneseq
  %v294 = vshrl.u32 %v293, 7
  %v295 = vsub.s32 0, %v294
  %v296 = vrot.slane %v291, %v295
  %vm298 = vcmask 130048
  %v300 = vsel %vm298, %v261, 0
  %v303 = vsel %vm298, %v266, 0
  %v306 = vsel %vm298, %v271, 0
  %v309 = vsel %vm298, %v276, 0
  %v312 = vsel %vm298, %v281, 0
  %v315 = vsel %vm298, %v286, 0
  %317 = vmatprep.subr.mxu0 0.0
  %318 = vmatpush1.msra.mxu0 %v289
  %319 = vmatprep.subr.mxu0 0.0
  %320 = vmatpush1.msra.mxu0 %v290
  %321 = vmatprep.subr.mxu0 0.0
  %322 = vmatpush1.msra.mxu0 0.0
  %323 = vmatprep.subr.mxu0 0.0
  %324 = vmatpush1.msra.mxu0 0.0
  %325 = vmatprep.subr.mxu0 0.0
  %326 = vmatpush1.msra.mxu0 0.0
  %327 = vmatprep.subr.mxu0 0.0
  %328 = vmatpush1.msra.mxu0 0.0
  %329 = vmatprep.subr.mxu0 0.0
  %330 = vmatpush1.msra.mxu0 0.0
  %331 = vmatprep.subr.mxu0 0.0
  %332 = vmatpush1.msra.mxu0 0.0
  %333 = vmatprep.subr.mxu0 0.0
  %334 = vmatpush1.msra.mxu0 0.0
  %335 = vmatprep.subr.mxu0 0.0
  %336 = vmatpush1.msra.mxu0 0.0
  %337 = vmatprep.subr.mxu0 0.0
  %338 = vmatpush1.msra.mxu0 0.0
  %339 = vmatprep.subr.mxu0 0.0
  %340 = vmatpush1.msra.mxu0 0.0
  %341 = vmatprep.subr.mxu0 0.0
  %342 = vmatpush1.msra.mxu0 0.0
  %343 = vmatprep.subr.mxu0 0.0
  %344 = vmatpush1.msra.mxu0 0.0
  %345 = vmatprep.subr.mxu0 0.0
  %346 = vmatpush1.msra.mxu0 0.0
  %347 = vmatprep.subr.mxu0 0.0
  %348 = vmatpush1.msra.mxu0 0.0
  %349 = vmatprep.subr.mxu0 0.0
  %350 = vmatpush1.msra.mxu0 0.0
  %351 = vmatprep.subr.mxu0 0.0
  %352 = vmatpush1.msra.mxu0 0.0
  %353 = vmatprep.subr.mxu0 0.0
  %354 = vmatpush1.msra.mxu0 0.0
  %355 = vmatprep.subr.mxu0 0.0
  %356 = vmatpush1.msra.mxu0 0.0
  %357 = vmatprep.subr.mxu0 0.0
  %358 = vmatpush1.msra.mxu0 0.0
  %359 = vmatprep.subr.mxu0 0.0
  %360 = vmatpush1.msra.mxu0 0.0
  %361 = vmatprep.subr.mxu0 0.0
  %362 = vmatpush1.msra.mxu0 0.0
  %363 = vmatprep.subr.mxu0 0.0
  %364 = vmatpush1.msra.mxu0 0.0
  %365 = vmatprep.subr.mxu0 0.0
  %366 = vmatpush1.msra.mxu0 0.0
  %367 = vmatprep.subr.mxu0 0.0
  %368 = vmatpush1.msra.mxu0 0.0
  %369 = vmatprep.subr.mxu0 0.0
  %370 = vmatpush1.msra.mxu0 0.0
  %371 = vmatprep.subr.mxu0 0.0
  %372 = vmatpush1.msra.mxu0 0.0
  %373 = vmatprep.subr.mxu0 0.0
  %374 = vmatpush1.msra.mxu0 0.0
  %375 = vmatprep.subr.mxu0 0.0
  %376 = vmatpush1.msra.mxu0 0.0
  %377 = vmatprep.subr.mxu0 0.0
  %378 = vmatpush1.msra.mxu0 0.0
  %379 = vmatprep.subr.mxu0 0.0
  %380 = vmatpush1.msra.mxu0 0.0
  %381 = vmatprep.mubr.f32.mxu0 0.0
  %382 = vmatmul.mubr.f32.gmra.mrb[0].mxu0 %v300
  %v383 = vpop.f32.mrb[0].mxu0
  %v384 = vadd.f32 %v296, %v383
  %v385 = vpop.f32.mrb[0].mxu0
  %386 = vmatprep.mubr.f32.mxu0 0.0
  %387 = vmatmul.mubr.f32.gmra.mrb[0].mxu0 %v303
  %v388 = vpop.f32.mrb[0].mxu0
  %v389 = vadd.f32 %v296, %v388
  %v390 = vpop.f32.mrb[0].mxu0
  %391 = vmatprep.mubr.f32.mxu0 0.0
  %392 = vmatmul.mubr.f32.gmra.mrb[0].mxu0 %v306
  %v393 = vpop.f32.mrb[0].mxu0
  %v394 = vadd.f32 %v296, %v393
  %v395 = vpop.f32.mrb[0].mxu0
  %396 = vmatprep.mubr.f32.mxu0 0.0
  %397 = vmatmul.mubr.f32.gmra.mrb[0].mxu0 %v309
  %v398 = vpop.f32.mrb[0].mxu0
  %v399 = vadd.f32 %v296, %v398
  %v400 = vpop.f32.mrb[0].mxu0
  %401 = vmatprep.mubr.f32.mxu0 0.0
  %402 = vmatmul.mubr.f32.gmra.mrb[0].mxu0 %v312
  %v403 = vpop.f32.mrb[0].mxu0
  %v404 = vadd.f32 %v296, %v403
  %v405 = vpop.f32.mrb[0].mxu0
  %406 = vmatprep.mubr.f32.mxu0 0.0
  %407 = vmatmul.mubr.f32.gmra.mrb[0].mxu0 %v315
  %v408 = vpop.f32.mrb[0].mxu0
  %v409 = vadd.f32 %v296, %v408
  %v410 = vpop.f32.mrb[0].mxu0
  %411 = vdwg.mxu0
  %v412 = vmax.f32 %v384, 0.0
  %v413 = vmax.f32 %v389, 0.0
  %v414 = vmax.f32 %v394, 0.0
  %v415 = vmax.f32 %v399, 0.0
  %v416 = vmax.f32 %v404, 0.0
  %v417 = vmax.f32 %v409, 0.0
  %v418 = vld [vmem:[%s7] sm:$0xff]
  %v419 = vld [vmem:[%s7 + $0x8] sm:$0xff]
  %v420 = vld [vmem:[%s7 + $0x10] sm:$0xff]
  %v421 = vld [vmem:[%s7 + $0x18] sm:$0xff]
  %v422 = vld [vmem:[%s7 + $0x20] sm:$0xff]
  %v423 = vld [vmem:[%s7 + $0x28] sm:$0xff]
  %v424 = vld [vmem:[%s7 + $0x30] sm:$0xff]
  %v425 = vld [vmem:[%s7 + $0x38] sm:$0xff]
  %v426 = vld [vmem:[%s7 + $0x40] sm:$0xff]
  %v427 = vld [vmem:[%s7 + $0x48] sm:$0xff]
  %v428 = vld [vmem:[%s7 + $0x50] sm:$0xff]
  %v429 = vld [vmem:[%s7 + $0x58] sm:$0xff]
  %v430 = vld [vmem:[%s7 + $0x60] sm:$0xff]
  %v431 = vld [vmem:[%s7 + $0x68] sm:$0xff]
  %v432 = vld [vmem:[%s7 + $0x70] sm:$0xff]
  %v433 = vld [vmem:[%s7 + $0x78] sm:$0xff]
  %v434 = vld [vmem:[%s8] sm:$0x1]
  %v436 = vlaneseq
  %v437 = vshrl.u32 %v436, 7
  %v438 = vsub.s32 0, %v437
  %v439 = vrot.slane %v434, %v438
  %441 = vmatprep.subr.mxu0 0.0
  %442 = vmatpush1.msra.mxu0 %v418
  %443 = vmatprep.subr.mxu0 0.0
  %444 = vmatpush1.msra.mxu0 %v419
  %445 = vmatprep.subr.mxu0 0.0
  %446 = vmatpush1.msra.mxu0 %v420
  %447 = vmatprep.subr.mxu0 0.0
  %448 = vmatpush1.msra.mxu0 %v421
  %449 = vmatprep.subr.mxu0 0.0
  %450 = vmatpush1.msra.mxu0 %v422
  %451 = vmatprep.subr.mxu0 0.0
  %452 = vmatpush1.msra.mxu0 %v423
  %453 = vmatprep.subr.mxu0 0.0
  %454 = vmatpush1.msra.mxu0 %v424
  %455 = vmatprep.subr.mxu0 0.0
  %456 = vmatpush1.msra.mxu0 %v425
  %457 = vmatprep.subr.mxu0 0.0
  %458 = vmatpush1.msra.mxu0 %v426
  %459 = vmatprep.subr.mxu0 0.0
  %460 = vmatpush1.msra.mxu0 %v427
  %461 = vmatprep.subr.mxu0 0.0
  %462 = vmatpush1.msra.mxu0 %v428
  %463 = vmatprep.subr.mxu0 0.0
  %464 = vmatpush1.msra.mxu0 %v429
  %465 = vmatprep.subr.mxu0 0.0
  %466 = vmatpush1.msra.mxu0 %v430
  %467 = vmatprep.subr.mxu0 0.0
  %468 = vmatpush1.msra.mxu0 %v431
  %469 = vmatprep.subr.mxu0 0.0
  %470 = vmatpush1.msra.mxu0 %v432
  %471 = vmatprep.subr.mxu0 0.0
  %472 = vmatpush1.msra.mxu0 %v433
  %473 = vmatprep.subr.mxu0 0.0
  %474 = vmatpush1.msra.mxu0 0.0
  %475 = vmatprep.subr.mxu0 0.0
  %476 = vmatpush1.msra.mxu0 0.0
  %477 = vmatprep.subr.mxu0 0.0
  %478 = vmatpush1.msra.mxu0 0.0
  %479 = vmatprep.subr.mxu0 0.0
  %480 = vmatpush1.msra.mxu0 0.0
  %481 = vmatprep.subr.mxu0 0.0
  %482 = vmatpush1.msra.mxu0 0.0
  %483 = vmatprep.subr.mxu0 0.0
  %484 = vmatpush1.msra.mxu0 0.0
  %485 = vmatprep.subr.mxu0 0.0
  %486 = vmatpush1.msra.mxu0 0.0
  %487 = vmatprep.subr.mxu0 0.0
  %488 = vmatpush1.msra.mxu0 0.0
  %489 = vmatprep.subr.mxu0 0.0
  %490 = vmatpush1.msra.mxu0 0.0
  %491 = vmatprep.subr.mxu0 0.0
  %492 = vmatpush1.msra.mxu0 0.0
  %493 = vmatprep.subr.mxu0 0.0
  %494 = vmatpush1.msra.mxu0 0.0
  %495 = vmatprep.subr.mxu0 0.0
  %496 = vmatpush1.msra.mxu0 0.0
  %497 = vmatprep.subr.mxu0 0.0
  %498 = vmatpush1.msra.mxu0 0.0
  %499 = vmatprep.subr.mxu0 0.0
  %500 = vmatpush1.msra.mxu0 0.0
  %501 = vmatprep.subr.mxu0 0.0
  %502 = vmatpush1.msra.mxu0 0.0
  %503 = vmatprep.subr.mxu0 0.0
  %504 = vmatpush1.msra.mxu0 0.0
  %505 = vmatprep.mubr.f32.mxu0 0.0
  %506 = vmatmul.mubr.f32.gmra.mrb[0].mxu0 %v412
  %v507 = vpop.f32.mrb[0].mxu0
  %v508 = vadd.f32 %v439, %v507
  %v509 = vpop.f32.mrb[0].mxu0
  %510 = vmatprep.mubr.f32.mxu0 0.0
  %511 = vmatmul.mubr.f32.gmra.mrb[0].mxu0 %v413
  %v512 = vpop.f32.mrb[0].mxu0
  %v513 = vadd.f32 %v439, %v512
  %v514 = vpop.f32.mrb[0].mxu0
  %515 = vmatprep.mubr.f32.mxu0 0.0
  %516 = vmatmul.mubr.f32.gmra.mrb[0].mxu0 %v414
  %v517 = vpop.f32.mrb[0].mxu0
  %v518 = vadd.f32 %v439, %v517
  %v519 = vpop.f32.mrb[0].mxu0
  %520 = vmatprep.mubr.f32.mxu0 0.0
  %521 = vmatmul.mubr.f32.gmra.mrb[0].mxu0 %v415
  %v522 = vpop.f32.mrb[0].mxu0
  %v523 = vadd.f32 %v439, %v522
  %v524 = vpop.f32.mrb[0].mxu0
  %525 = vmatprep.mubr.f32.mxu0 0.0
  %526 = vmatmul.mubr.f32.gmra.mrb[0].mxu0 %v416
  %v527 = vpop.f32.mrb[0].mxu0
  %v528 = vadd.f32 %v439, %v527
  %v529 = vpop.f32.mrb[0].mxu0
  %530 = vmatprep.mubr.f32.mxu0 0.0
  %531 = vmatmul.mubr.f32.gmra.mrb[0].mxu0 %v417
  %v532 = vpop.f32.mrb[0].mxu0
  %v533 = vadd.f32 %v439, %v532
  %v534 = vpop.f32.mrb[0].mxu0
  %535 = vdwg.mxu0
  %536 = vst.msk [vmem:[%s9] sm:$0xff] %vm298, %v261
  %537 = vst.msk [vmem:[%s9 + $0x8] sm:$0xff] %vm298, %v266
  %538 = vst.msk [vmem:[%s9 + $0x10] sm:$0xff] %vm298, %v271
  %539 = vst.msk [vmem:[%s9 + $0x18] sm:$0xff] %vm298, %v276
  %540 = vst.msk [vmem:[%s9 + $0x20] sm:$0xff] %vm298, %v281
  %541 = vst.msk [vmem:[%s9 + $0x28] sm:$0xff] %vm298, %v286
  %542 = vst.msk [vmem:[%s10] sm:$0xff] %vm51, %v508
  %543 = vst.msk [vmem:[%s10 + $0x8] sm:$0xff] %vm51, %v513
  %544 = vst.msk [vmem:[%s10 + $0x10] sm:$0xff] %vm51, %v518
  %545 = vst.msk [vmem:[%s10 + $0x18] sm:$0xff] %vm51, %v523
  %546 = vst.msk [vmem:[%s10 + $0x20] sm:$0xff] %vm51, %v528
  %547 = vst.msk [vmem:[%s10 + $0x28] sm:$0xff] %vm51, %v533
  // Predicated region
  $region38: #{tpu_custom_call.1} parent=0 // pred_check
    _
  $region39: #{tpu_custom_call.1} parent=0 // pred_check_branch
    %549 = sbr.rel (0) target = $region41
  $region40: #{tpu_custom_call.1} parent=0 // pred_region
    _
  $region41: #{tpu_custom_call.1} parent=0 // pred_fallthru
    _
  // Predicated region
  $region42: #{tpu_custom_call.1} parent=0 // pred_check
    _
  $region43: #{tpu_custom_call.1} parent=0 // pred_check_branch
    %551 = sbr.rel (0) target = $region45
  $region44: #{tpu_custom_call.1} parent=0 // pred_region
    _
  $region45: #{tpu_custom_call.1} parent=0 // pred_fallthru
    _
  // Predicated region
  $region46: #{tpu_custom_call.1} parent=0 // pred_check
    _
  $region47: #{tpu_custom_call.1} parent=0 // pred_check_branch
    %553 = sbr.rel (0) target = $region49
  $region48: #{tpu_custom_call.1} parent=0 // pred_region
    _
  $region49: #{tpu_custom_call.1} parent=0 // pred_fallthru
    _
  // Predicated region
  $region50: #{tpu_custom_call.1} parent=0 // pred_check
    _
  $region51: #{tpu_custom_call.1} parent=0 // pred_check_branch
    %555 = sbr.rel (0) target = $region53
  $region52: #{tpu_custom_call.1} parent=0 // pred_region
    _
  $region53: #{tpu_custom_call.1} parent=0 // pred_fallthru
    _

</llo_original>
